<compile_context>
chip_gen: v5e
topology: v5e:2x2
jax: 0.10.0
libtpu: 0.0.40
codegen_flags: <defaults>
</compile_context>

<pallas_src>
import functools

import jax
import jax.numpy as jnp
from jax import lax
from jax.experimental import pallas as pl
from jax.experimental.pallas import tpu as pltpu

_GEM_EPS = 1e-6
_BN_EPS = 1e-5
_LEAKY_SLOPE = 0.01
_LANE = 128
_VMEM_HEADROOM = 8 << 20        # leave room for compiler-internal scratch
_FEATURE_BUDGET_CAP = 48 << 20  # max bytes for the double-buffered feature tile


# ---------------------------------------------------------------------------
# Small helpers: rounding, chip queries, (8,128)-aware VMEM accounting
# ---------------------------------------------------------------------------
def _round_up(x, m):
    return ((x + m - 1) // m) * m


def _vmem_capacity_bytes():
    """Physical VMEM per TensorCore (generation-aware vmem_limit cap)."""
    try:
        info = pltpu.get_tpu_info()
        cap = getattr(info, "vmem_capacity_bytes", None)
        if cap:
            return int(cap)
    except Exception:
        pass
    return 64 << 20  # conservative fallback = v7x per-core VMEM


def _num_tensorcores():
    """Best-effort TensorCores-per-chip (v7x has 2); harmless if unknown."""
    try:
        info = pltpu.get_tpu_info()
        for name in ("tensorcore_count", "num_tensorcores", "num_cores",
                     "core_count"):
            v = getattr(info, name, None)
            if v:
                return int(v)
    except Exception:
        pass
    return 1


def _sublane_multiple(dtype):
    # sub-32-bit dtypes pack along sublanes: (8,128) f32, (16,128) bf16, ...
    return 8 * max(1, 4 // jnp.dtype(dtype).itemsize)


def _padded_block_bytes(shape, dtype):
    """VMEM bytes of ONE buffer of a block, honoring the (8,128) tiling of the
    last two dims (the previous revision under-counted this padding)."""
    dims = [int(d) for d in shape]
    dims[-1] = _round_up(dims[-1], _LANE)
    if len(dims) >= 2:
        dims[-2] = _round_up(dims[-2], _sublane_multiple(dtype))
    n = 1
    for d in dims:
        n *= d
    return n * jnp.dtype(dtype).itemsize


def _pick_batch_tile(B, bytes_per_row, budget, min_steps):
    """Largest batch tile (multiple of 8 dividing B) whose double-buffered
    footprint fits `budget`, preferring >= min_steps grid steps for overlap."""
    candidates = [tb for tb in range(8, B + 1, 8) if B % tb == 0]
    if not candidates:
        return B
    fitting = [tb for tb in candidates if 2 * tb * bytes_per_row <= budget]
    if not fitting:
        return candidates[0]
    pipelined = [tb for tb in fitting if B // tb >= min_steps]
    return max(pipelined) if pipelined else max(fitting)


def _pick_c_tile(C, bytes_per_channel_2buf, budget, min_steps=2):
    """Channel tile (multiple of 128 dividing C) for the small-batch path."""
    if C % _LANE != 0:
        return C  # full-extent block (single step), still correct
    candidates = [tc for tc in range(_LANE, C + 1, _LANE) if C % tc == 0]
    fitting = [tc for tc in candidates if tc * bytes_per_channel_2buf <= budget]
    if not fitting:
        return candidates[0]
    pipelined = [tc for tc in fitting if C // tc >= min_steps]
    return max(pipelined) if pipelined else max(fitting)


# ---------------------------------------------------------------------------
# GeM pooling over the sublane (HW) axis of a (..., HW, C) block
# ---------------------------------------------------------------------------
def _gem_pool(x, gem_p, p_int):
    """Returns (mean_HW clamp(x, eps)^p)^(1/p) in f32, shape (..., C)."""
    if p_int is not None:
        # exact integer exponent: repeated multiply, VALU only, f32 accumulation
        xf = jnp.maximum(x.astype(jnp.float32), _GEM_EPS)
        acc = xf
        for _ in range(p_int - 1):
            acc = acc * xf
        m = jnp.mean(acc, axis=-2)
    else:
        # general learnable p: exp/log on the big map in bf16 (EUP), f32 mean
        xb = jnp.maximum(x.astype(jnp.bfloat16), _GEM_EPS)
        xp = jnp.exp(jnp.log(xb) * gem_p)
        m = jnp.mean(xp.astype(jnp.float32), axis=-2)
    return m ** (1.0 / gem_p)  # tiny (rows, C) tensor: pow here is cheap


# ---------------------------------------------------------------------------
# Kernels
# ---------------------------------------------------------------------------
def _spe_head_kernel_btile(feat_ref,   # (tb, HW, C)   backbone features (bf16)
                           w1_ref,     # (C, EPAD)     BN-folded embedding weight
                           b1_ref,     # (1, EPAD)     BN-folded embedding bias
                           w2_ref,     # (EPAD, NPAD)  out weight (padded)
                           b2_ref,     # (1, NPAD)     out bias (padded)
                           out_ref,    # (tb, NPAD)
                           *, gem_p, p_int):
    pooled = _gem_pool(feat_ref[...], gem_p, p_int)               # (tb, C) f32
    emb = jnp.dot(pooled, w1_ref[...],
                  preferred_element_type=jnp.float32) + b1_ref[...]
    emb = jnp.maximum(emb, _LEAKY_SLOPE * emb)                    # LeakyReLU(0.01)
    out = jnp.dot(emb, w2_ref[...],
                  preferred_element_type=jnp.float32) + b2_ref[...]
    out_ref[...] = out.astype(out_ref.dtype)


def _spe_head_kernel_ctile(feat_ref,   # (B, HW, tc)
                           w1_ref,     # (tc, EPAD)
                           b1_ref,     # (1, EPAD)
                           w2_ref,     # (EPAD, NPAD)
                           b2_ref,     # (1, NPAD)
                           out_ref,    # (B, NPAD)
                           acc_ref,    # (B, EPAD) f32 scratch accumulator
                           *, gem_p, p_int):
    k = pl.program_id(0)

    @pl.when(k == 0)
    def _():
        acc_ref[...] = jnp.zeros_like(acc_ref)

    # GeM over HW is complete within each channel chunk, so per-chunk
    # pooled @ w1_chunk accumulation is exact.
    pooled = _gem_pool(feat_ref[...], gem_p, p_int)               # (B, tc) f32
    acc_ref[...] += jnp.dot(pooled, w1_ref[...],
                            preferred_element_type=jnp.float32)

    @pl.when(k == pl.num_programs(0) - 1)
    def _():
        emb = acc_ref[...] + b1_ref[...]
        emb = jnp.maximum(emb, _LEAKY_SLOPE * emb)
        out = jnp.dot(emb, w2_ref[...],
                      preferred_element_type=jnp.float32) + b2_ref[...]
        out_ref[...] = out.astype(out_ref.dtype)


# ---------------------------------------------------------------------------
# One-time parameter preparation (hoisted out of the per-call path)
# ---------------------------------------------------------------------------
def prepare_spe_head_params(params):
    """Fold BatchNorm1d (eval) into the embedding Linear, zero-pad to
    lane-dense shapes, and resolve the GeM exponent once per parameter set."""
    gem_p = float(params.get("gem_p", 3.0))  # one-time host sync, not per call
    p_round = int(round(gem_p))
    p_int = p_round if (abs(gem_p - p_round) < 1e-6 and 1 <= p_round <= 8) else None

    w_emb = jnp.asarray(params["w_emb"], jnp.float32)            # (C, E)
    b_emb = jnp.asarray(params["b_emb"], jnp.float32).reshape(1, -1)
    gamma = jnp.asarray(params["gamma"], jnp.float32).reshape(1, -1)
    beta = jnp.asarray(params["beta"], jnp.float32).reshape(1, -1)
    rmean = jnp.asarray(params["rmean"], jnp.float32).reshape(1, -1)
    rvar = jnp.asarray(params["rvar"], jnp.float32).reshape(1, -1)
    w_out = jnp.asarray(params["w_out"], jnp.float32)            # (E, NCLS)
    b_out = jnp.asarray(params["b_out"], jnp.float32).reshape(1, -1)

    C, E = w_emb.shape
    NCLS = w_out.shape[1]

    # Fold BatchNorm1d (eval mode, running stats) into the embedding Linear.
    # TODO(synk): training-mode BatchNorm (batch statistics) is not implemented.
    scale = gamma * lax.rsqrt(rvar + _BN_EPS)                    # (1, E)
    w1 = w_emb * scale
    b1 = (b_emb - rmean) * scale + beta

    # Zero-pad E and NCLS to lane-dense multiples of 128 (zeros are exact) so
    # both MXU matmuls and the output store are unmasked.
    EPAD = _round_up(E, _LANE)
    NPAD = _round_up(NCLS, _LANE)
    w1p = jnp.zeros((C, EPAD), jnp.float32).at[:, :E].set(w1)
    b1p = jnp.zeros((1, EPAD), jnp.float32).at[:, :E].set(b1)
    w2p = jnp.zeros((EPAD, NPAD), jnp.float32).at[:E, :NCLS].set(w_out)
    b2p = jnp.zeros((1, NPAD), jnp.float32).at[:, :NCLS].set(b_out)

    # Materialize now so the per-call path does no BN-fold / padding work.
    w1p, b1p, w2p, b2p = jax.block_until_ready((w1p, b1p, w2p, b2p))

    return {"gem_p": gem_p, "p_int": p_int, "C": C, "E": E, "NCLS": NCLS,
            "EPAD": EPAD, "NPAD": NPAD,
            "w1p": w1p, "b1p": b1p, "w2p": w2p, "b2p": b2p}


# ---------------------------------------------------------------------------
# pallas_call builders
# ---------------------------------------------------------------------------
def _spe_head_batch_tiled(feats, prepared):
    """B is a multiple of 8: tile the batch ('parallel' grid, megacore-aware)."""
    B, HW, C = feats.shape
    EPAD, NPAD = prepared["EPAD"], prepared["NPAD"]
    gem_p, p_int = prepared["gem_p"], prepared["p_int"]
    w1p, b1p, w2p, b2p = (prepared[k] for k in ("w1p", "b1p", "w2p", "b2p"))

    cap = _vmem_capacity_bytes()
    min_steps = 2 * _num_tensorcores()  # >=2 grid steps per TC for DMA overlap
    bytes_per_row = _padded_block_bytes((HW, C), feats.dtype) + NPAD * 4

    def _weight_bytes(nbuf):
        return nbuf * (_padded_block_bytes((C, EPAD), jnp.float32)
                       + _padded_block_bytes((1, EPAD), jnp.float32)
                       + _padded_block_bytes((EPAD, NPAD), jnp.float32)
                       + _padded_block_bytes((1, NPAD), jnp.float32))

    def _build_and_call(single_buffer_weights):
        nbuf = 1 if single_buffer_weights else 2
        wbytes = _weight_bytes(nbuf)
        budget = max(4 << 20,
                     min(int(0.75 * (cap - _VMEM_HEADROOM)) - wbytes,
                         _FEATURE_BUDGET_CAP))
        tb = _pick_batch_tile(B, bytes_per_row, budget, min_steps)
        est = wbytes + 2 * tb * bytes_per_row + (4 << 20)
        vmem_limit = int(min(cap - _VMEM_HEADROOM,
                             max(int(est * 1.25), 32 << 20)))

        def cspec(shape):
            idx = lambda i: (0,) * len(shape)
            if single_buffer_weights:
                # constants are never re-fetched; one buffer halves their VMEM
                return pl.BlockSpec(shape, idx, pipeline_mode=pl.Buffered(1))
            return pl.BlockSpec(shape, idx)

        out = pl.pallas_call(
            functools.partial(_spe_head_kernel_btile, gem_p=gem_p, p_int=p_int),
            out_shape=jax.ShapeDtypeStruct((B, NPAD), jnp.float32),
            grid=(B // tb,),
            in_specs=[
                pl.BlockSpec((tb, HW, C), lambda i: (i, 0, 0)),
                cspec((C, EPAD)),
                cspec((1, EPAD)),
                cspec((EPAD, NPAD)),
                cspec((1, NPAD)),
            ],
            out_specs=pl.BlockSpec((tb, NPAD), lambda i: (i, 0)),
            compiler_params=pltpu.CompilerParams(
                dimension_semantics=("parallel",),
                vmem_limit_bytes=vmem_limit),
        )(feats, w1p, b1p, w2p, b2p)
        return jax.block_until_ready(out)

    try:
        return _build_and_call(True)
    except Exception:
        # pipeline_mode=pl.Buffered(1) unsupported on this jax build: fall back
        # to the default double-buffered constants (correctness unchanged).
        return _build_and_call(False)


def _spe_head_c_tiled(feats, prepared):
    """Small / ragged batch (B < 8 or B % 8 != 0): tile the channel axis
    ('arbitrary' reduction grid) and accumulate pooled_chunk @ w1_chunk into an
    f32 VMEM scratch; the tiny head runs on the last step."""
    B, HW, C = feats.shape
    EPAD, NPAD = prepared["EPAD"], prepared["NPAD"]
    gem_p, p_int = prepared["gem_p"], prepared["p_int"]
    w1p, b1p, w2p, b2p = (prepared[k] for k in ("w1p", "b1p", "w2p", "b2p"))

    cap = _vmem_capacity_bytes()
    itemsize = jnp.dtype(feats.dtype).itemsize
    feat_chan_bytes = B * _round_up(HW, _sublane_multiple(feats.dtype)) * itemsize
    w1_chan_bytes = EPAD * 4
    fixed_1buf = (_padded_block_bytes((1, EPAD), jnp.float32)
                  + _padded_block_bytes((EPAD, NPAD), jnp.float32)
                  + _padded_block_bytes((1, NPAD), jnp.float32))
    acc_bytes = _padded_block_bytes((B, EPAD), jnp.float32)
    out_bytes = 2 * _padded_block_bytes((B, NPAD), jnp.float32)

    def _build_and_call(single_buffer_weights):
        nbuf = 1 if single_buffer_weights else 2
        budget = max(2 << 20,
                     min(int(0.75 * (cap - _VMEM_HEADROOM))
                         - nbuf * fixed_1buf - acc_bytes - out_bytes,
                         _FEATURE_BUDGET_CAP))
        tc = _pick_c_tile(C, 2 * (feat_chan_bytes + w1_chan_bytes), budget)
        est = (nbuf * fixed_1buf + acc_bytes + out_bytes
               + 2 * tc * (feat_chan_bytes + w1_chan_bytes) + (4 << 20))
        vmem_limit = int(min(cap - _VMEM_HEADROOM,
                             max(int(est * 1.25), 32 << 20)))

        def cspec(shape):
            idx = lambda k: (0,) * len(shape)
            if single_buffer_weights:
                return pl.BlockSpec(shape, idx, pipeline_mode=pl.Buffered(1))
            return pl.BlockSpec(shape, idx)

        out = pl.pallas_call(
            functools.partial(_spe_head_kernel_ctile, gem_p=gem_p, p_int=p_int),
            out_shape=jax.ShapeDtypeStruct((B, NPAD), jnp.float32),
            grid=(C // tc,),
            in_specs=[
                pl.BlockSpec((B, HW, tc), lambda k: (0, 0, k)),
                pl.BlockSpec((tc, EPAD), lambda k: (k, 0)),
                cspec((1, EPAD)),
                cspec((EPAD, NPAD)),
                cspec((1, NPAD)),
            ],
            out_specs=pl.BlockSpec((B, NPAD), lambda k: (0, 0)),
            scratch_shapes=[pltpu.VMEM((B, EPAD), jnp.float32)],
            compiler_params=pltpu.CompilerParams(
                dimension_semantics=("arbitrary",),
                vmem_limit_bytes=vmem_limit),
        )(feats, w1p, b1p, w2p, b2p)
        return jax.block_until_ready(out)

    try:
        return _build_and_call(True)
    except Exception:
        return _build_and_call(False)


def spe_head(features_nchw, prepared, *, feature_dtype=jnp.bfloat16):
    """Forward pass of the Spe head on a backbone feature map (B, C, H, W)."""
    B, C, H, W = features_nchw.shape
    assert C == prepared["C"], (C, prepared["C"])
    HW = H * W
    # Lane-dense NHWC-style layout (B, HW, C): channels sit on lanes (C=1792 is
    # 14*128 for efficientnet_b4) and GeM reduces over the sublane (HW) axis;
    # feature DMA rows are contiguous.  bf16 halves the HBM traffic of the
    # mem-bound feature read; accumulation inside the kernel stays f32.
    # TODO(synk): have the backbone emit NHWC directly so this transpose is free.
    feats = jnp.transpose(
        features_nchw.astype(feature_dtype).reshape(B, C, HW), (0, 2, 1))

    if B >= 8 and B % 8 == 0:
        out_padded = _spe_head_batch_tiled(feats, prepared)
    else:
        out_padded = _spe_head_c_tiled(feats, prepared)
    return out_padded[:, :prepared["NCLS"]]


# ---------------------------------------------------------------------------
# Pure-JAX reference for verification
# ---------------------------------------------------------------------------
def spe_head_ref(features_nchw, params):
    p = float(params.get("gem_p", 3.0))
    x = jnp.maximum(features_nchw.astype(jnp.float32), _GEM_EPS)
    pooled = jnp.mean(x ** p, axis=(2, 3)) ** (1.0 / p)                # (B, C)
    emb = pooled @ params["w_emb"].astype(jnp.float32) + params["b_emb"].reshape(-1)
    inv_std = lax.rsqrt(params["rvar"].reshape(-1) + _BN_EPS)
    emb = (emb - params["rmean"].reshape(-1)) * inv_std * \
          params["gamma"].reshape(-1) + params["beta"].reshape(-1)
    emb = jnp.where(emb >= 0.0, emb, _LEAKY_SLOPE * emb)
    return emb @ params["w_out"] + params["b_out"].reshape(-1)


def _make_params(key, C, E, NCLS, gem_p=3.0):
    ks = jax.random.split(key, 8)
    return {
        "gem_p": gem_p,                              # GeM learnable p (init 3.0)
        # Linear weights stored pre-transposed: (in, out)
        "w_emb": jax.random.normal(ks[0], (C, E), jnp.float32) * 0.05,
        "b_emb": jax.random.normal(ks[1], (1, E), jnp.float32) * 0.01,
        "gamma": 1.0 + 0.1 * jax.random.normal(ks[2], (1, E), jnp.float32),
        "beta": 0.1 * jax.random.normal(ks[3], (1, E), jnp.float32),
        "rmean": 0.05 * jax.random.normal(ks[4], (1, E), jnp.float32),
        "rvar": jnp.abs(1.0 + 0.1 * jax.random.normal(ks[5], (1, E), jnp.float32)),
        "w_out": jax.random.normal(ks[6], (E, NCLS), jnp.float32) * 0.05,
        "b_out": jax.random.normal(ks[7], (1, NCLS), jnp.float32) * 0.01,
    }


if __name__ == "__main__":
    root = jax.random.PRNGKey(0)
    k_feat1, k_par1, k_feat2, k_par2 = jax.random.split(root, 4)

    # ---- Test 1: batch-tiled path (B % 8 == 0), integer GeM p = 3 ----------
    B, C, H, W = 16, 64, 8, 8
    E, NCLS = 32, 28
    features = jax.random.normal(k_feat1, (B, C, H, W), jnp.float32)
    params = _make_params(k_par1, C, E, NCLS, gem_p=3.0)
    prepared = prepare_spe_head_params(params)

    out = jax.block_until_ready(spe_head(features, prepared))
    # Kernel consumes bf16 features: compare tightly against the reference on
    # the same quantized features, and loosely against the full-f32 reference.
    feats_q = features.astype(jnp.bfloat16).astype(jnp.float32)
    ref_q = spe_head_ref(feats_q, params)
    ref_f = spe_head_ref(features, params)
    assert out.shape == (B, NCLS), out.shape
    assert jnp.allclose(out, ref_q, rtol=5e-3, atol=5e-3), \
        float(jnp.max(jnp.abs(out - ref_q)))
    assert jnp.allclose(out, ref_f, rtol=2e-2, atol=2e-2), \
        float(jnp.max(jnp.abs(out - ref_f)))

    # ---- Test 2: small / ragged batch -> channel-tiled reduction path ------
    B2, C2, H2, W2 = 2, 256, 4, 4
    E2, NCLS2 = 64, 28
    features2 = jax.random.normal(k_feat2, (B2, C2, H2, W2), jnp.float32)
    params2 = _make_params(k_par2, C2, E2, NCLS2, gem_p=3.0)
    prepared2 = prepare_spe_head_params(params2)

    out2 = jax.block_until_ready(spe_head(features2, prepared2))
    f2q = features2.astype(jnp.bfloat16).astype(jnp.float32)
    ref2 = spe_head_ref(f2q, params2)
    assert out2.shape == (B2, NCLS2), out2.shape
    assert jnp.allclose(out2, ref2, rtol=5e-3, atol=5e-3), \
        float(jnp.max(jnp.abs(out2 - ref2)))

    # ---- Test 3: general (learned, non-integer) GeM p -> bf16 EUP pow path -
    params3 = dict(params2, gem_p=3.4)
    prepared3 = prepare_spe_head_params(params3)
    out3 = jax.block_until_ready(spe_head(features2, prepared3))
    ref3 = spe_head_ref(f2q, params3)
    assert jnp.allclose(out3, ref3, rtol=2e-2, atol=2e-2), \
        float(jnp.max(jnp.abs(out3 - ref3)))

    print("KERNEL_OK")
</pallas_src>

<mosaic_0001>
module attributes {stable_mosaic.version = 11 : i64} {
  func.func @_spe_head_kernel_btile(%arg0: i32, %arg1: memref<8x64x64xbf16, #tpu.memory_space<vmem>>, %arg2: memref<64x128xf32, #tpu.memory_space<vmem>>, %arg3: memref<1x128xf32, #tpu.memory_space<vmem>>, %arg4: memref<128x128xf32, #tpu.memory_space<vmem>>, %arg5: memref<1x128xf32, #tpu.memory_space<vmem>>, %arg6: memref<8x128xf32, #tpu.memory_space<vmem>>) attributes {dimension_semantics = [#tpu.dimension_semantics<parallel>], iteration_bounds = array<i64: 2>, scalar_prefetch = 0 : i64, scratch_operands = 0 : i64, tpu.core_type = #tpu.core_type<tc>, window_params = [{transform_indices = @transform_0, window_bounds = array<i64: 8, 64, 64>}, {pipeline_mode = #tpu.pipeline_mode<synchronous>, transform_indices = @transform_1, window_bounds = array<i64: 64, 128>}, {pipeline_mode = #tpu.pipeline_mode<synchronous>, transform_indices = @transform_2, window_bounds = array<i64: 1, 128>}, {pipeline_mode = #tpu.pipeline_mode<synchronous>, transform_indices = @transform_3, window_bounds = array<i64: 128, 128>}, {pipeline_mode = #tpu.pipeline_mode<synchronous>, transform_indices = @transform_4, window_bounds = array<i64: 1, 128>}, {transform_indices = @transform_5, window_bounds = array<i64: 8, 128>}]} {
    %c0 = arith.constant 0 : index
    %c0_0 = arith.constant 0 : index
    %c0_1 = arith.constant 0 : index
    %0 = vector.load %arg1[%c0, %c0_0, %c0_1] : memref<8x64x64xbf16, #tpu.memory_space<vmem>>, vector<8x64x64xbf16>
    %1 = arith.extf %0 : vector<8x64x64xbf16> to vector<8x64x64xf32>
    %cst = arith.constant 9.99999997E-7 : f32
    %2 = vector.broadcast %cst : f32 to vector<8x64x64xf32>
    %3 = arith.maximumf %1, %2 : vector<8x64x64xf32>
    %4 = arith.mulf %3, %3 : vector<8x64x64xf32>
    %5 = arith.mulf %4, %3 : vector<8x64x64xf32>
    %cst_2 = arith.constant dense<0.000000e+00> : vector<8x64xf32>
    %6 = vector.multi_reduction <add>, %5, %cst_2 [1] : vector<8x64x64xf32> to vector<8x64xf32>
    %cst_3 = arith.constant 6.400000e+01 : f32
    %7 = vector.broadcast %cst_3 : f32 to vector<8x64xf32>
    %8 = arith.divf %6, %7 : vector<8x64xf32>
    %cst_4 = arith.constant 0.333333343 : f32
    %9 = vector.broadcast %cst_4 : f32 to vector<8x64xf32>
    %10 = math.powf %8, %9 : vector<8x64xf32>
    %c0_5 = arith.constant 0 : index
    %c0_6 = arith.constant 0 : index
    %11 = vector.load %arg2[%c0_5, %c0_6] : memref<64x128xf32, #tpu.memory_space<vmem>>, vector<64x128xf32>
    %cst_7 = arith.constant dense<0.000000e+00> : vector<8x128xf32>
    %12 = tpu.matmul %10, %11, %cst_7 {dimension_numbers = #tpu.dot_dimension_numbers<[1], [0], [0], [1], [0, 0, 1, 1], [], []>} : vector<8x64xf32>, vector<64x128xf32>, vector<8x128xf32> -> vector<8x128xf32>
    %c0_8 = arith.constant 0 : index
    %c0_9 = arith.constant 0 : index
    %13 = vector.load %arg3[%c0_8, %c0_9] : memref<1x128xf32, #tpu.memory_space<vmem>>, vector<1x128xf32>
    %14 = vector.broadcast %13 : vector<1x128xf32> to vector<8x128xf32>
    %15 = arith.addf %12, %14 : vector<8x128xf32>
    %cst_10 = arith.constant 0.00999999977 : f32
    %16 = vector.broadcast %cst_10 : f32 to vector<8x128xf32>
    %17 = arith.mulf %16, %15 : vector<8x128xf32>
    %18 = arith.maximumf %15, %17 : vector<8x128xf32>
    %c0_11 = arith.constant 0 : index
    %c0_12 = arith.constant 0 : index
    %19 = vector.load %arg4[%c0_11, %c0_12] : memref<128x128xf32, #tpu.memory_space<vmem>>, vector<128x128xf32>
    %cst_13 = arith.constant dense<0.000000e+00> : vector<8x128xf32>
    %20 = tpu.matmul %18, %19, %cst_13 {dimension_numbers = #tpu.dot_dimension_numbers<[1], [0], [0], [1], [0, 0, 1, 1], [], []>} : vector<8x128xf32>, vector<128x128xf32>, vector<8x128xf32> -> vector<8x128xf32>
    %c0_14 = arith.constant 0 : index
    %c0_15 = arith.constant 0 : index
    %21 = vector.load %arg5[%c0_14, %c0_15] : memref<1x128xf32, #tpu.memory_space<vmem>>, vector<1x128xf32>
    %22 = vector.broadcast %21 : vector<1x128xf32> to vector<8x128xf32>
    %23 = arith.addf %20, %22 : vector<8x128xf32>
    %c0_16 = arith.constant 0 : index
    %c0_17 = arith.constant 0 : index
    %24 = vector.load %arg6[%c0_16, %c0_17] : memref<8x128xf32, #tpu.memory_space<vmem>>, vector<8x128xf32>
    tpu.vector_store %arg6[%c0_16, %c0_17], %23 {strides = array<i32>} : memref<8x128xf32, #tpu.memory_space<vmem>>, vector<8x128xf32>,
    return
  }
  func.func @transform_0(%arg0: i32) -> (i32, i32, i32) {
    %c0_i32 = arith.constant 0 : i32
    %c0_i32_0 = arith.constant 0 : i32
    %c0_i32_1 = arith.constant 0 : i32
    return %arg0, %c0_i32, %c0_i32_0 : i32, i32, i32
  }
  func.func @transform_1(%arg0: i32) -> (i32, i32) {
    %c0_i32 = arith.constant 0 : i32
    %c0_i32_0 = arith.constant 0 : i32
    %c0_i32_1 = arith.constant 0 : i32
    return %c0_i32, %c0_i32_0 : i32, i32
  }
  func.func @transform_2(%arg0: i32) -> (i32, i32) {
    %c0_i32 = arith.constant 0 : i32
    %c0_i32_0 = arith.constant 0 : i32
    %c0_i32_1 = arith.constant 0 : i32
    return %c0_i32, %c0_i32_0 : i32, i32
  }
  func.func @transform_3(%arg0: i32) -> (i32, i32) {
    %c0_i32 = arith.constant 0 : i32
    %c0_i32_0 = arith.constant 0 : i32
    %c0_i32_1 = arith.constant 0 : i32
    return %c0_i32, %c0_i32_0 : i32, i32
  }
  func.func @transform_4(%arg0: i32) -> (i32, i32) {
    %c0_i32 = arith.constant 0 : i32
    %c0_i32_0 = arith.constant 0 : i32
    %c0_i32_1 = arith.constant 0 : i32
    return %c0_i32, %c0_i32_0 : i32, i32
  }
  func.func @transform_5(%arg0: i32) -> (i32, i32) {
    %c0_i32 = arith.constant 0 : i32
    %c0_i32_0 = arith.constant 0 : i32
    return %arg0, %c0_i32 : i32, i32
  }
}

module attributes {stable_mosaic.version = 11 : i64} {
  func.func @_spe_head_kernel_btile(%arg0: i32, %arg1: memref<8x64x64xbf16, #tpu.memory_space<vmem>>, %arg2: memref<64x128xf32, #tpu.memory_space<vmem>>, %arg3: memref<1x128xf32, #tpu.memory_space<vmem>>, %arg4: memref<128x128xf32, #tpu.memory_space<vmem>>, %arg5: memref<1x128xf32, #tpu.memory_space<vmem>>, %arg6: memref<8x128xf32, #tpu.memory_space<vmem>>) attributes {dimension_semantics = [#tpu.dimension_semantics<parallel>], iteration_bounds = array<i64: 2>, scalar_prefetch = 0 : i64, scratch_operands = 0 : i64, tpu.core_type = #tpu.core_type<tc>, window_params = [{transform_indices = @transform_0, window_bounds = array<i64: 8, 64, 64>}, {pipeline_mode = #tpu.pipeline_mode<synchronous>, transform_indices = @transform_1, window_bounds = array<i64: 64, 128>}, {pipeline_mode = #tpu.pipeline_mode<synchronous>, transform_indices = @transform_2, window_bounds = array<i64: 1, 128>}, {pipeline_mode = #tpu.pipeline_mode<synchronous>, transform_indices = @transform_3, window_bounds = array<i64: 128, 128>}, {pipeline_mode = #tpu.pipeline_mode<synchronous>, transform_indices = @transform_4, window_bounds = array<i64: 1, 128>}, {transform_indices = @transform_5, window_bounds = array<i64: 8, 128>}]} {
    %c0 = arith.constant 0 : index
    %c0_0 = arith.constant 0 : index
    %c0_1 = arith.constant 0 : index
    %0 = vector.load %arg1[%c0, %c0_0, %c0_1] : memref<8x64x64xbf16, #tpu.memory_space<vmem>>, vector<8x64x64xbf16>
    %1 = arith.extf %0 : vector<8x64x64xbf16> to vector<8x64x64xf32>
    %cst = arith.constant 9.99999997E-7 : f32
    %2 = vector.broadcast %cst : f32 to vector<8x64x64xf32>
    %3 = arith.maximumf %1, %2 : vector<8x64x64xf32>
    %4 = arith.mulf %3, %3 : vector<8x64x64xf32>
    %5 = arith.mulf %4, %3 : vector<8x64x64xf32>
    %cst_2 = arith.constant dense<0.000000e+00> : vector<8x64xf32>
    %6 = vector.multi_reduction <add>, %5, %cst_2 [1] : vector<8x64x64xf32> to vector<8x64xf32>
    %cst_3 = arith.constant 6.400000e+01 : f32
    %7 = vector.broadcast %cst_3 : f32 to vector<8x64xf32>
    %8 = arith.divf %6, %7 : vector<8x64xf32>
    %cst_4 = arith.constant 0.333333343 : f32
    %9 = vector.broadcast %cst_4 : f32 to vector<8x64xf32>
    %10 = math.powf %8, %9 : vector<8x64xf32>
    %c0_5 = arith.constant 0 : index
    %c0_6 = arith.constant 0 : index
    %11 = vector.load %arg2[%c0_5, %c0_6] : memref<64x128xf32, #tpu.memory_space<vmem>>, vector<64x128xf32>
    %cst_7 = arith.constant dense<0.000000e+00> : vector<8x128xf32>
    %12 = tpu.matmul %10, %11, %cst_7 {dimension_numbers = #tpu.dot_dimension_numbers<[1], [0], [0], [1], [0, 0, 1, 1], [], []>} : vector<8x64xf32>, vector<64x128xf32>, vector<8x128xf32> -> vector<8x128xf32>
    %c0_8 = arith.constant 0 : index
    %c0_9 = arith.constant 0 : index
    %13 = vector.load %arg3[%c0_8, %c0_9] : memref<1x128xf32, #tpu.memory_space<vmem>>, vector<1x128xf32>
    %14 = vector.broadcast %13 : vector<1x128xf32> to vector<8x128xf32>
    %15 = arith.addf %12, %14 : vector<8x128xf32>
    %cst_10 = arith.constant 0.00999999977 : f32
    %16 = vector.broadcast %cst_10 : f32 to vector<8x128xf32>
    %17 = arith.mulf %16, %15 : vector<8x128xf32>
    %18 = arith.maximumf %15, %17 : vector<8x128xf32>
    %c0_11 = arith.constant 0 : index
    %c0_12 = arith.constant 0 : index
    %19 = vector.load %arg4[%c0_11, %c0_12] : memref<128x128xf32, #tpu.memory_space<vmem>>, vector<128x128xf32>
    %cst_13 = arith.constant dense<0.000000e+00> : vector<8x128xf32>
    %20 = tpu.matmul %18, %19, %cst_13 {dimension_numbers = #tpu.dot_dimension_numbers<[1], [0], [0], [1], [0, 0, 1, 1], [], []>} : vector<8x128xf32>, vector<128x128xf32>, vector<8x128xf32> -> vector<8x128xf32>
    %c0_14 = arith.constant 0 : index
    %c0_15 = arith.constant 0 : index
    %21 = vector.load %arg5[%c0_14, %c0_15] : memref<1x128xf32, #tpu.memory_space<vmem>>, vector<1x128xf32>
    %22 = vector.broadcast %21 : vector<1x128xf32> to vector<8x128xf32>
    %23 = arith.addf %20, %22 : vector<8x128xf32>
    %c0_16 = arith.constant 0 : index
    %c0_17 = arith.constant 0 : index
    %24 = vector.load %arg6[%c0_16, %c0_17] : memref<8x128xf32, #tpu.memory_space<vmem>>, vector<8x128xf32>
    tpu.vector_store %arg6[%c0_16, %c0_17], %23 {strides = array<i32>} : memref<8x128xf32, #tpu.memory_space<vmem>>, vector<8x128xf32>,
    return
  }
  func.func @transform_0(%arg0: i32) -> (i32, i32, i32) {
    %c0_i32 = arith.constant 0 : i32
    %c0_i32_0 = arith.constant 0 : i32
    %c0_i32_1 = arith.constant 0 : i32
    return %arg0, %c0_i32, %c0_i32_0 : i32, i32, i32
  }
  func.func @transform_1(%arg0: i32) -> (i32, i32) {
    %c0_i32 = arith.constant 0 : i32
    %c0_i32_0 = arith.constant 0 : i32
    %c0_i32_1 = arith.constant 0 : i32
    return %c0_i32, %c0_i32_0 : i32, i32
  }
  func.func @transform_2(%arg0: i32) -> (i32, i32) {
    %c0_i32 = arith.constant 0 : i32
    %c0_i32_0 = arith.constant 0 : i32
    %c0_i32_1 = arith.constant 0 : i32
    return %c0_i32, %c0_i32_0 : i32, i32
  }
  func.func @transform_3(%arg0: i32) -> (i32, i32) {
    %c0_i32 = arith.constant 0 : i32
    %c0_i32_0 = arith.constant 0 : i32
    %c0_i32_1 = arith.constant 0 : i32
    return %c0_i32, %c0_i32_0 : i32, i32
  }
  func.func @transform_4(%arg0: i32) -> (i32, i32) {
    %c0_i32 = arith.constant 0 : i32
    %c0_i32_0 = arith.constant 0 : i32
    %c0_i32_1 = arith.constant 0 : i32
    return %c0_i32, %c0_i32_0 : i32, i32
  }
  func.func @transform_5(%arg0: i32) -> (i32, i32) {
    %c0_i32 = arith.constant 0 : i32
    %c0_i32_0 = arith.constant 0 : i32
    return %arg0, %c0_i32 : i32, i32
  }
}

</mosaic_0001>

<llo_original>
// kernel: tpu_custom_call.1
$region0: #{tpu_custom_call.1}
  #allocation0 [shape = 'u32[]', space=smem, size = 0x4, offset = 0x4, fixed_abs, tag = 'smem constant byte address 0x4 - core index']
  #allocation1 [shape = 'u32[72,128]{1,0:T(1,128)}', space=vmem, size = 0x9000, scoped, tag = 'internal scratch']
  %s0 = inlined_call_operand.hbm [shape: bf16[16,64,64], index: 0, kind: input, shape index: {}]
  %s1 = inlined_call_operand.hbm [shape: f32[64,128], index: 1, kind: input, shape index: {}]
  %s2 = inlined_call_operand.vmem [shape: f32[1,128], index: 2, kind: input, shape index: {}]
  %s3 = inlined_call_operand.hbm [shape: f32[128,128], index: 3, kind: input, shape index: {}]
  %s4 = inlined_call_operand.vmem [shape: f32[1,128], index: 4, kind: input, shape index: {}]
  %s5 = inlined_call_operand.hbm [shape: f32[16,128], index: 5, kind: output, shape index: {}]
  %s6 = sld [smem:[#allocation0]]
  $region65: #{tpu_custom_call.1} parent=0
    _
  %s8 = ssub.s32 1, %s6
  %s9 = scalar_select 0, %s8, %s6
  $region1: #{tpu_custom_call.1} parent=0
    #allocation2 [shape = 'u8[262144]{0}', space=vmem, size = 0x40000, scoped, tag = 'input window, operand 0']
    #allocation3 [shape = 's32[2]{0}', space=sflag, size = 0x8, scoped, tag = 'scoped memory for tpu_custom_call.1']
    #allocation4 [shape = 's32[2]{0}', space=sflag, size = 0x8, scoped, tag = 'scoped memory for tpu_custom_call.1']
    #allocation5 [shape = 'u8[32768]{0}', space=vmem, size = 0x8000, scoped, tag = 'input window, operand 1, single buffered']
    #allocation6 [shape = 's32[1]{0}', space=sflag, size = 0x4, scoped, tag = 'scoped memory for tpu_custom_call.1']
    #allocation7 [shape = 'u8[65536]{0}', space=vmem, size = 0x10000, scoped, tag = 'input window, operand 3, single buffered']
    #allocation8 [shape = 'u8[8192]{0}', space=vmem, size = 0x2000, scoped, tag = 'output window, operand 0']
    %10 = vsyncpa [#allocation3], 0
    %s11 = scalar_lea.sflag [#allocation3], 1
    %12 = vsyncpa %s11, 0
    %13 = vsyncpa [#allocation6], 0
    %14 = vsyncpa [#allocation4], 0
    %s15 = scalar_lea.sflag [#allocation4], 1
    %16 = vsyncpa %s15, 0
    loop: start=0, step=1, limit=4
    $region2: #{tpu_custom_call.1} parent=1 // loop_pre_header
      _
    $region3: #{tpu_custom_call.1} parent=1 // loop_header
      %s18 = sphi 0, %s22
      %p19 = scmp.ge.s32.totalorder %s18, 4
      %s28 = sphi 0, %s30
      %s31 = sphi 0, %s28
      %s32 = sphi 0, %s31
      %s48 = sphi 0, %s32
      %s52 = sphi 0, %s52
      %s54 = sphi 0, %s52
      %s55 = sphi 0, %s54
      %s69 = sphi 0, %s55
      %s73 = sphi 0, %s73
      %s75 = sphi 0, %s73
      %s76 = sphi 0, %s75
      %s90 = sphi 0, %s76
      %s94 = sphi 0, %s94
      %s96 = sphi 0, %s94
      %s97 = sphi 0, %s96
      %s111 = sphi 0, %s97
      %s115 = sphi 0, %s115
      %s117 = sphi 0, %s115
      %s118 = sphi 0, %s117
      %s132 = sphi 0, %s118
      %s138 = sphi 0, %s140
      %s141 = sphi 0, %s138
      %s142 = sphi 0, %s141
      %s158 = sphi 0, %s142
    $region4: #{tpu_custom_call.1} parent=1 // loop_header_branch
      %21 = sbr.rel (%p19) target = $region8
    $region5: #{tpu_custom_call.1} parent=1 // loop_body
      %s23 = ssub.s32 %s18, 1
      %s24 = ssub.s32 %s18, 2
      %s25 = sadd.s32 %s18, 1
      %s26 = ssub.s32 %s18, %s25
      %p27 = scmp.eq.s32.totalorder %s26, 0
      %s29 = sadd.s32 %s28, 1
      %s30 = scalar_select %p27, %s28, %s29
      %p33 = pneg %p27
      %p34 = scmp.eq.s32.totalorder %s18, 1
      %p35 = por %p33, %p34
      %p36 = scmp.ne.s32.totalorder %s28, %s31
      %p37 = scmp.eq.s32.totalorder %s18, 0
      %p38 = por %p36, %p37
      %p39 = scmp.ne.s32.totalorder %s28, %s31
      %p40 = scmp.eq.s32.totalorder %s23, 1
      %p41 = por %p39, %p40
      %p42 = scmp.ne.s32.totalorder %s31, %s32
      %p43 = scmp.eq.s32.totalorder %s23, 0
      %p44 = por %p42, %p43
      %p45 = scmp.ne.s32.totalorder %s31, %s32
      %p46 = scmp.eq.s32.totalorder %s24, 1
      %p47 = por %p45, %p46
      %p49 = scmp.ne.s32.totalorder %s32, %s48
      %p50 = scmp.eq.s32.totalorder %s24, 0
      %p51 = por %p49, %p50
      %s53 = sadd.s32 %s52, 1
      %p56 = scmp.eq.s32.totalorder %s18, 1
      %p57 = scmp.ne.s32.totalorder %s52, %s54
      %p58 = scmp.eq.s32.totalorder %s18, 0
      %p59 = por %p57, %p58
      %p60 = scmp.ne.s32.totalorder %s52, %s54
      %p61 = scmp.eq.s32.totalorder %s23, 1
      %p62 = por %p60, %p61
      %p63 = scmp.ne.s32.totalorder %s54, %s55
      %p64 = scmp.eq.s32.totalorder %s23, 0
      %p65 = por %p63, %p64
      %p66 = scmp.ne.s32.totalorder %s54, %s55
      %p67 = scmp.eq.s32.totalorder %s24, 1
      %p68 = por %p66, %p67
      %p70 = scmp.ne.s32.totalorder %s55, %s69
      %p71 = scmp.eq.s32.totalorder %s24, 0
      %p72 = por %p70, %p71
      %s74 = sadd.s32 %s73, 1
      %p77 = scmp.eq.s32.totalorder %s18, 1
      %p78 = scmp.ne.s32.totalorder %s73, %s75
      %p79 = scmp.eq.s32.totalorder %s18, 0
      %p80 = por %p78, %p79
      %p81 = scmp.ne.s32.totalorder %s73, %s75
      %p82 = scmp.eq.s32.totalorder %s23, 1
      %p83 = por %p81, %p82
      %p84 = scmp.ne.s32.totalorder %s75, %s76
      %p85 = scmp.eq.s32.totalorder %s23, 0
      %p86 = por %p84, %p85
      %p87 = scmp.ne.s32.totalorder %s75, %s76
      %p88 = scmp.eq.s32.totalorder %s24, 1
      %p89 = por %p87, %p88
      %p91 = scmp.ne.s32.totalorder %s76, %s90
      %p92 = scmp.eq.s32.totalorder %s24, 0
      %p93 = por %p91, %p92
      %s95 = sadd.s32 %s94, 1
      %p98 = scmp.eq.s32.totalorder %s18, 1
      %p99 = scmp.ne.s32.totalorder %s94, %s96
      %p100 = scmp.eq.s32.totalorder %s18, 0
      %p101 = por %p99, %p100
      %p102 = scmp.ne.s32.totalorder %s94, %s96
      %p103 = scmp.eq.s32.totalorder %s23, 1
      %p104 = por %p102, %p103
      %p105 = scmp.ne.s32.totalorder %s96, %s97
      %p106 = scmp.eq.s32.totalorder %s23, 0
      %p107 = por %p105, %p106
      %p108 = scmp.ne.s32.totalorder %s96, %s97
      %p109 = scmp.eq.s32.totalorder %s24, 1
      %p110 = por %p108, %p109
      %p112 = scmp.ne.s32.totalorder %s97, %s111
      %p113 = scmp.eq.s32.totalorder %s24, 0
      %p114 = por %p112, %p113
      %s116 = sadd.s32 %s115, 1
      %p119 = scmp.eq.s32.totalorder %s18, 1
      %p120 = scmp.ne.s32.totalorder %s115, %s117
      %p121 = scmp.eq.s32.totalorder %s18, 0
      %p122 = por %p120, %p121
      %p123 = scmp.ne.s32.totalorder %s115, %s117
      %p124 = scmp.eq.s32.totalorder %s23, 1
      %p125 = por %p123, %p124
      %p126 = scmp.ne.s32.totalorder %s117, %s118
      %p127 = scmp.eq.s32.totalorder %s23, 0
      %p128 = por %p126, %p127
      %p129 = scmp.ne.s32.totalorder %s117, %s118
      %p130 = scmp.eq.s32.totalorder %s24, 1
      %p131 = por %p129, %p130
      %p133 = scmp.ne.s32.totalorder %s118, %s132
      %p134 = scmp.eq.s32.totalorder %s24, 0
      %p135 = por %p133, %p134
      %s136 = ssub.s32 %s18, %s25
      %p137 = scmp.eq.s32.totalorder %s136, 0
      %s139 = sadd.s32 %s138, 1
      %s140 = scalar_select %p137, %s138, %s139
      %p143 = pneg %p137
      %p144 = scmp.eq.s32.totalorder %s18, 1
      %p145 = por %p143, %p144
      %p146 = scmp.ne.s32.totalorder %s138, %s141
      %p147 = scmp.eq.s32.totalorder %s18, 0
      %p148 = por %p146, %p147
      %p149 = scmp.ne.s32.totalorder %s138, %s141
      %p150 = scmp.eq.s32.totalorder %s23, 1
      %p151 = por %p149, %p150
      %p152 = scmp.ne.s32.totalorder %s141, %s142
      %p153 = scmp.eq.s32.totalorder %s23, 0
      %p154 = por %p152, %p153
      %p155 = scmp.ne.s32.totalorder %s141, %s142
      %p156 = scmp.eq.s32.totalorder %s24, 1
      %p157 = por %p155, %p156
      %p159 = scmp.ne.s32.totalorder %s142, %s158
      %p160 = scmp.eq.s32.totalorder %s24, 0
      %p161 = por %p159, %p160
      %p162 = scmp.le.s32.totalorder 1, %s18
      %p163 = scmp.lt.s32.totalorder %s18, 3
      %p164 = pnand %p162, %p163
      %p165 = pneg %p164
      // Predicated region
      $region9: #{tpu_custom_call.1} parent=5 // pred_check
        _
      $region10: #{tpu_custom_call.1} parent=5 // pred_check_branch
        %167 = sbr.rel (%p164) target = $region12
      $region11: #{tpu_custom_call.1} parent=5 // pred_region
        %s168 = ssub.s32 %s18, 1
        // Predicated region
        $region13: #{tpu_custom_call.1} parent=11 // pred_check
          %p169 = pneg %p65
        $region14: #{tpu_custom_call.1} parent=11 // pred_check_branch
          %171 = sbr.rel (%p169) target = $region16
        $region15: #{tpu_custom_call.1} parent=11 // pred_region
          %173 = vsyncadd [#allocation6], 0
          %s174 = sshll.u32 %s1, 4
          %s175 = int_to_ptr.hbm [resolvable:$true] %s174
          %s176 = sshll.u32 [#allocation5], 4
          %s177 = int_to_ptr.vmem [resolvable:$true] %s176
          %182 = dma.hbm_to_vmem [thread:$0]  %s175, 1024, %s177, [#allocation6], 128, 128, 8
        $region16: #{tpu_custom_call.1} parent=11 // pred_fallthru
          _
        // Predicated region
        $region17: #{tpu_custom_call.1} parent=11 // pred_check
          %p183 = pneg %p86
        $region18: #{tpu_custom_call.1} parent=11 // pred_check_branch
          %185 = sbr.rel (%p183) target = $region20
        $region19: #{tpu_custom_call.1} parent=11 // pred_region
          _
        $region20: #{tpu_custom_call.1} parent=11 // pred_fallthru
          _
        // Predicated region
        $region21: #{tpu_custom_call.1} parent=11 // pred_check
          %p186 = pneg %p107
        $region22: #{tpu_custom_call.1} parent=11 // pred_check_branch
          %188 = sbr.rel (%p186) target = $region24
        $region23: #{tpu_custom_call.1} parent=11 // pred_region
          %190 = vsyncadd [#allocation6], 0
          %s191 = sshll.u32 %s3, 4
          %s192 = int_to_ptr.hbm [resolvable:$true] %s191
          %s193 = sshll.u32 [#allocation7], 4
          %s194 = int_to_ptr.vmem [resolvable:$true] %s193
          %199 = dma.hbm_to_vmem [thread:$0]  %s192, 2048, %s194, [#allocation6], 128, 128, 8
        $region24: #{tpu_custom_call.1} parent=11 // pred_fallthru
          _
        // Predicated region
        $region25: #{tpu_custom_call.1} parent=11 // pred_check
          %p200 = pneg %p128
        $region26: #{tpu_custom_call.1} parent=11 // pred_check_branch
          %202 = sbr.rel (%p200) target = $region28
        $region27: #{tpu_custom_call.1} parent=11 // pred_region
          _
        $region28: #{tpu_custom_call.1} parent=11 // pred_fallthru
          _
      $region12: #{tpu_custom_call.1} parent=5 // pred_fallthru
        _
      %p203 = scmp.lt.s32.totalorder %s18, 2
      // Predicated region
      $region29: #{tpu_custom_call.1} parent=5 // pred_check
        %p204 = pneg %p203
      $region30: #{tpu_custom_call.1} parent=5 // pred_check_branch
        %206 = sbr.rel (%p204) target = $region32
      $region31: #{tpu_custom_call.1} parent=5 // pred_region
        // Predicated region
        $region33: #{tpu_custom_call.1} parent=31 // pred_check
          %p207 = pneg %p38
        $region34: #{tpu_custom_call.1} parent=31 // pred_check_branch
          %209 = sbr.rel (%p207) target = $region36
        $region35: #{tpu_custom_call.1} parent=31 // pred_region
          %s210 = sand.u32 %s28, 1
          %s211 = scalar_lea.sflag [#allocation3], %s210
          %s212 = sand.u32 %s28, 1
          %s213 = smul.addr %s212, 256
          %s214 = scalar_lea.vmem [#allocation2], %s213
          %s215 = smul.u32 8, %s18
          %217 = vsyncadd %s211, 0
          %s218 = smul.addr %s215, 8
          %s219 = smul.addr %s218, 4
          %s220 = scalar_lea.hbm %s0, %s219
          %s221 = sshll.u32 %s220, 4
          %s222 = int_to_ptr.hbm [resolvable:$true] %s221
          %s223 = sshll.u32 %s214, 4
          %s224 = int_to_ptr.vmem [resolvable:$true] %s223
          %229 = dma.hbm_to_vmem [thread:$0]  %s222, 4096, %s224, %s211, 64, 64, 4
        $region36: #{tpu_custom_call.1} parent=31 // pred_fallthru
          _
      $region32: #{tpu_custom_call.1} parent=5 // pred_fallthru
        _
      %p230 = scmp.le.s32.totalorder 1, %s18
      %p231 = scmp.lt.s32.totalorder %s18, 3
      %p232 = pnand %p230, %p231
      %p233 = pneg %p232
      // Predicated region
      $region37: #{tpu_custom_call.1} parent=5 // pred_check
        _
      $region38: #{tpu_custom_call.1} parent=5 // pred_check_branch
        %235 = sbr.rel (%p232) target = $region40
      $region39: #{tpu_custom_call.1} parent=5 // pred_region
        %s236 = ssub.s32 %s18, 1
        %s237 = sand.u32 %s31, 1
        %s238 = scalar_lea.sflag [#allocation3], %s237
        %s239 = sand.u32 %s31, 1
        %s240 = smul.addr %s239, 256
        %s241 = scalar_lea.vmem [#allocation2], %s240
        // Predicated region
        $region41: #{tpu_custom_call.1} parent=39 // pred_check
          %p242 = pneg %p44
        $region42: #{tpu_custom_call.1} parent=39 // pred_check_branch
          %244 = sbr.rel (%p242) target = $region44
        $region43: #{tpu_custom_call.1} parent=39 // pred_region
          %246 = dma.done %s238, 4096
        $region44: #{tpu_custom_call.1} parent=39 // pred_fallthru
          _
        // Predicated region
        $region45: #{tpu_custom_call.1} parent=39 // pred_check
          %p247 = pneg %p65
        $region46: #{tpu_custom_call.1} parent=39 // pred_check_branch
          %249 = sbr.rel (%p247) target = $region48
        $region47: #{tpu_custom_call.1} parent=39 // pred_region
          %251 = dma.done [#allocation6], 1024
        $region48: #{tpu_custom_call.1} parent=39 // pred_fallthru
          _
        // Predicated region
        $region49: #{tpu_custom_call.1} parent=39 // pred_check
          %p252 = pneg %p107
        $region50: #{tpu_custom_call.1} parent=39 // pred_check_branch
          %254 = sbr.rel (%p252) target = $region52
        $region51: #{tpu_custom_call.1} parent=39 // pred_region
          %256 = dma.done [#allocation6], 2048
        $region52: #{tpu_custom_call.1} parent=39 // pred_fallthru
          _
        %s257 = sand.u32 %s31, 1
        %s258 = scalar_lea.sflag [#allocation3], %s257
        %s259 = sand.u32 %s31, 1
        %s260 = smul.addr %s259, 256
        %s261 = scalar_lea.vmem [#allocation2], %s260
        %p262 = pneg %p44
        %p263 = pneg %p41
        %p264 = pneg %p65
        %p265 = pneg %p62
        %p266 = pneg %p86
        %p267 = pneg %p83
        %p268 = pneg %p107
        %p269 = pneg %p104
        %p270 = pneg %p128
        %p271 = pneg %p125
        %p272 = pneg %p154
        %p273 = pneg %p151
        %s274 = sand.u32 %s141, 1
        %s275 = scalar_lea.sflag [#allocation4], %s274
        %s276 = sand.u32 %s141, 1
        %s277 = smul.addr %s276, 8
        %s278 = scalar_lea.vmem [#allocation8], %s277
        %s279 = smul.u32 8, %s23
        %v280 = vld [vmem:[%s241] sm:$0xf]
        %v281 = vld [vmem:[%s241 + $0x4] sm:$0xf]
        %v282 = vld [vmem:[%s241 + $0x8] sm:$0xf]
        %v283 = vld [vmem:[%s241 + $0xc] sm:$0xf]
        %v284 = vld [vmem:[%s241 + $0x10] sm:$0xf]
        %v285 = vld [vmem:[%s241 + $0x14] sm:$0xf]
        %v286 = vld [vmem:[%s241 + $0x18] sm:$0xf]
        %v287 = vld [vmem:[%s241 + $0x1c] sm:$0xf]
        %v288 = vld [vmem:[%s241 + $0x20] sm:$0xf]
        %v289 = vld [vmem:[%s241 + $0x24] sm:$0xf]
        %v290 = vld [vmem:[%s241 + $0x28] sm:$0xf]
        %v291 = vld [vmem:[%s241 + $0x2c] sm:$0xf]
        %v292 = vld [vmem:[%s241 + $0x30] sm:$0xf]
        %v293 = vld [vmem:[%s241 + $0x34] sm:$0xf]
        %v294 = vld [vmem:[%s241 + $0x38] sm:$0xf]
        %v295 = vld [vmem:[%s241 + $0x3c] sm:$0xf]
        %v296 = vld [vmem:[%s241 + $0x40] sm:$0xf]
        %v297 = vld [vmem:[%s241 + $0x44] sm:$0xf]
        %v298 = vld [vmem:[%s241 + $0x48] sm:$0xf]
        %v299 = vld [vmem:[%s241 + $0x4c] sm:$0xf]
        %v300 = vld [vmem:[%s241 + $0x50] sm:$0xf]
        %v301 = vld [vmem:[%s241 + $0x54] sm:$0xf]
        %v302 = vld [vmem:[%s241 + $0x58] sm:$0xf]
        %v303 = vld [vmem:[%s241 + $0x5c] sm:$0xf]
        %v304 = vld [vmem:[%s241 + $0x60] sm:$0xf]
        %v305 = vld [vmem:[%s241 + $0x64] sm:$0xf]
        %v306 = vld [vmem:[%s241 + $0x68] sm:$0xf]
        %v307 = vld [vmem:[%s241 + $0x6c] sm:$0xf]
        %v308 = vld [vmem:[%s241 + $0x70] sm:$0xf]
        %v309 = vld [vmem:[%s241 + $0x74] sm:$0xf]
        %v310 = vld [vmem:[%s241 + $0x78] sm:$0xf]
        %v311 = vld [vmem:[%s241 + $0x7c] sm:$0xf]
        %v312 = vld [vmem:[%s241 + $0x80] sm:$0xf]
        %v313 = vld [vmem:[%s241 + $0x84] sm:$0xf]
        %v314 = vld [vmem:[%s241 + $0x88] sm:$0xf]
        %v315 = vld [vmem:[%s241 + $0x8c] sm:$0xf]
        %v316 = vld [vmem:[%s241 + $0x90] sm:$0xf]
        %v317 = vld [vmem:[%s241 + $0x94] sm:$0xf]
        %v318 = vld [vmem:[%s241 + $0x98] sm:$0xf]
        %v319 = vld [vmem:[%s241 + $0x9c] sm:$0xf]
        %v320 = vld [vmem:[%s241 + $0xa0] sm:$0xf]
        %v321 = vld [vmem:[%s241 + $0xa4] sm:$0xf]
        %v322 = vld [vmem:[%s241 + $0xa8] sm:$0xf]
        %v323 = vld [vmem:[%s241 + $0xac] sm:$0xf]
        %v324 = vld [vmem:[%s241 + $0xb0] sm:$0xf]
        %v325 = vld [vmem:[%s241 + $0xb4] sm:$0xf]
        %v326 = vld [vmem:[%s241 + $0xb8] sm:$0xf]
        %v327 = vld [vmem:[%s241 + $0xbc] sm:$0xf]
        %v328 = vld [vmem:[%s241 + $0xc0] sm:$0xf]
        %v329 = vld [vmem:[%s241 + $0xc4] sm:$0xf]
        %v330 = vld [vmem:[%s241 + $0xc8] sm:$0xf]
        %v331 = vld [vmem:[%s241 + $0xcc] sm:$0xf]
        %v332 = vld [vmem:[%s241 + $0xd0] sm:$0xf]
        %v333 = vld [vmem:[%s241 + $0xd4] sm:$0xf]
        %v334 = vld [vmem:[%s241 + $0xd8] sm:$0xf]
        %v335 = vld [vmem:[%s241 + $0xdc] sm:$0xf]
        %v336 = vld [vmem:[%s241 + $0xe0] sm:$0xf]
        %v337 = vld [vmem:[%s241 + $0xe4] sm:$0xf]
        %v338 = vld [vmem:[%s241 + $0xe8] sm:$0xf]
        %v339 = vld [vmem:[%s241 + $0xec] sm:$0xf]
        %v340 = vld [vmem:[%s241 + $0xf0] sm:$0xf]
        %v341 = vld [vmem:[%s241 + $0xf4] sm:$0xf]
        %v342 = vld [vmem:[%s241 + $0xf8] sm:$0xf]
        %v343 = vld [vmem:[%s241 + $0xfc] sm:$0xf]
        %v344 = vunpack.c.l.bf16 %v280
        %v345 = vunpack.c.l.bf16 %v281
        %v346 = vunpack.c.l.bf16 %v282
        %v347 = vunpack.c.l.bf16 %v283
        %v348 = vunpack.c.l.bf16 %v284
        %v349 = vunpack.c.l.bf16 %v285
        %v350 = vunpack.c.l.bf16 %v286
        %v351 = vunpack.c.l.bf16 %v287
        %v352 = vunpack.c.l.bf16 %v288
        %v353 = vunpack.c.l.bf16 %v289
        %v354 = vunpack.c.l.bf16 %v290
        %v355 = vunpack.c.l.bf16 %v291
        %v356 = vunpack.c.l.bf16 %v292
        %v357 = vunpack.c.l.bf16 %v293
        %v358 = vunpack.c.l.bf16 %v294
        %v359 = vunpack.c.l.bf16 %v295
        %v360 = vunpack.c.l.bf16 %v296
        %v361 = vunpack.c.l.bf16 %v297
        %v362 = vunpack.c.l.bf16 %v298
        %v363 = vunpack.c.l.bf16 %v299
        %v364 = vunpack.c.l.bf16 %v300
        %v365 = vunpack.c.l.bf16 %v301
        %v366 = vunpack.c.l.bf16 %v302
        %v367 = vunpack.c.l.bf16 %v303
        %v368 = vunpack.c.l.bf16 %v304
        %v369 = vunpack.c.l.bf16 %v305
        %v370 = vunpack.c.l.bf16 %v306
        %v371 = vunpack.c.l.bf16 %v307
        %v372 = vunpack.c.l.bf16 %v308
        %v373 = vunpack.c.l.bf16 %v309
        %v374 = vunpack.c.l.bf16 %v310
        %v375 = vunpack.c.l.bf16 %v311
        %v376 = vunpack.c.l.bf16 %v312
        %v377 = vunpack.c.l.bf16 %v313
        %v378 = vunpack.c.l.bf16 %v314
        %v379 = vunpack.c.l.bf16 %v315
        %v380 = vunpack.c.l.bf16 %v316
        %v381 = vunpack.c.l.bf16 %v317
        %v382 = vunpack.c.l.bf16 %v318
        %v383 = vunpack.c.l.bf16 %v319
        %v384 = vunpack.c.l.bf16 %v320
        %v385 = vunpack.c.l.bf16 %v321
        %v386 = vunpack.c.l.bf16 %v322
        %v387 = vunpack.c.l.bf16 %v323
        %v388 = vunpack.c.l.bf16 %v324
        %v389 = vunpack.c.l.bf16 %v325
        %v390 = vunpack.c.l.bf16 %v326
        %v391 = vunpack.c.l.bf16 %v327
        %v392 = vunpack.c.l.bf16 %v328
        %v393 = vunpack.c.l.bf16 %v329
        %v394 = vunpack.c.l.bf16 %v330
        %v395 = vunpack.c.l.bf16 %v331
        %v396 = vunpack.c.l.bf16 %v332
        %v397 = vunpack.c.l.bf16 %v333
        %v398 = vunpack.c.l.bf16 %v334
        %v399 = vunpack.c.l.bf16 %v335
        %v400 = vunpack.c.l.bf16 %v336
        %v401 = vunpack.c.l.bf16 %v337
        %v402 = vunpack.c.l.bf16 %v338
        %v403 = vunpack.c.l.bf16 %v339
        %v404 = vunpack.c.l.bf16 %v340
        %v405 = vunpack.c.l.bf16 %v341
        %v406 = vunpack.c.l.bf16 %v342
        %v407 = vunpack.c.l.bf16 %v343
        %v408 = vmax.f32 %v344, 1e-06
        %v409 = vmax.f32 %v345, 1e-06
        %v410 = vmax.f32 %v346, 1e-06
        %v411 = vmax.f32 %v347, 1e-06
        %v412 = vmax.f32 %v348, 1e-06
        %v413 = vmax.f32 %v349, 1e-06
        %v414 = vmax.f32 %v350, 1e-06
        %v415 = vmax.f32 %v351, 1e-06
        %v416 = vmax.f32 %v352, 1e-06
        %v417 = vmax.f32 %v353, 1e-06
        %v418 = vmax.f32 %v354, 1e-06
        %v419 = vmax.f32 %v355, 1e-06
        %v420 = vmax.f32 %v356, 1e-06
        %v421 = vmax.f32 %v357, 1e-06
        %v422 = vmax.f32 %v358, 1e-06
        %v423 = vmax.f32 %v359, 1e-06
        %v424 = vmax.f32 %v360, 1e-06
        %v425 = vmax.f32 %v361, 1e-06
        %v426 = vmax.f32 %v362, 1e-06
        %v427 = vmax.f32 %v363, 1e-06
        %v428 = vmax.f32 %v364, 1e-06
        %v429 = vmax.f32 %v365, 1e-06
        %v430 = vmax.f32 %v366, 1e-06
        %v431 = vmax.f32 %v367, 1e-06
        %v432 = vmax.f32 %v368, 1e-06
        %v433 = vmax.f32 %v369, 1e-06
        %v434 = vmax.f32 %v370, 1e-06
        %v435 = vmax.f32 %v371, 1e-06
        %v436 = vmax.f32 %v372, 1e-06
        %v437 = vmax.f32 %v373, 1e-06
        %v438 = vmax.f32 %v374, 1e-06
        %v439 = vmax.f32 %v375, 1e-06
        %v440 = vmax.f32 %v376, 1e-06
        %v441 = vmax.f32 %v377, 1e-06
        %v442 = vmax.f32 %v378, 1e-06
        %v443 = vmax.f32 %v379, 1e-06
        %v444 = vmax.f32 %v380, 1e-06
        %v445 = vmax.f32 %v381, 1e-06
        %v446 = vmax.f32 %v382, 1e-06
        %v447 = vmax.f32 %v383, 1e-06
        %v448 = vmax.f32 %v384, 1e-06
        %v449 = vmax.f32 %v385, 1e-06
        %v450 = vmax.f32 %v386, 1e-06
        %v451 = vmax.f32 %v387, 1e-06
        %v452 = vmax.f32 %v388, 1e-06
        %v453 = vmax.f32 %v389, 1e-06
        %v454 = vmax.f32 %v390, 1e-06
        %v455 = vmax.f32 %v391, 1e-06
        %v456 = vmax.f32 %v392, 1e-06
        %v457 = vmax.f32 %v393, 1e-06
        %v458 = vmax.f32 %v394, 1e-06
        %v459 = vmax.f32 %v395, 1e-06
        %v460 = vmax.f32 %v396, 1e-06
        %v461 = vmax.f32 %v397, 1e-06
        %v462 = vmax.f32 %v398, 1e-06
        %v463 = vmax.f32 %v399, 1e-06
        %v464 = vmax.f32 %v400, 1e-06
        %v465 = vmax.f32 %v401, 1e-06
        %v466 = vmax.f32 %v402, 1e-06
        %v467 = vmax.f32 %v403, 1e-06
        %v468 = vmax.f32 %v404, 1e-06
        %v469 = vmax.f32 %v405, 1e-06
        %v470 = vmax.f32 %v406, 1e-06
        %v471 = vmax.f32 %v407, 1e-06
        %v472 = vmul.f32 %v408, %v408
        %v473 = vmul.f32 %v409, %v409
        %v474 = vmul.f32 %v410, %v410
        %v475 = vmul.f32 %v411, %v411
        %v476 = vmul.f32 %v412, %v412
        %v477 = vmul.f32 %v413, %v413
        %v478 = vmul.f32 %v414, %v414
        %v479 = vmul.f32 %v415, %v415
        %v480 = vmul.f32 %v416, %v416
        %v481 = vmul.f32 %v417, %v417
        %v482 = vmul.f32 %v418, %v418
        %v483 = vmul.f32 %v419, %v419
        %v484 = vmul.f32 %v420, %v420
        %v485 = vmul.f32 %v421, %v421
        %v486 = vmul.f32 %v422, %v422
        %v487 = vmul.f32 %v423, %v423
        %v488 = vmul.f32 %v424, %v424
        %v489 = vmul.f32 %v425, %v425
        %v490 = vmul.f32 %v426, %v426
        %v491 = vmul.f32 %v427, %v427
        %v492 = vmul.f32 %v428, %v428
        %v493 = vmul.f32 %v429, %v429
        %v494 = vmul.f32 %v430, %v430
        %v495 = vmul.f32 %v431, %v431
        %v496 = vmul.f32 %v432, %v432
        %v497 = vmul.f32 %v433, %v433
        %v498 = vmul.f32 %v434, %v434
        %v499 = vmul.f32 %v435, %v435
        %v500 = vmul.f32 %v436, %v436
        %v501 = vmul.f32 %v437, %v437
        %v502 = vmul.f32 %v438, %v438
        %v503 = vmul.f32 %v439, %v439
        %v504 = vmul.f32 %v440, %v440
        %v505 = vmul.f32 %v441, %v441
        %v506 = vmul.f32 %v442, %v442
        %v507 = vmul.f32 %v443, %v443
        %v508 = vmul.f32 %v444, %v444
        %v509 = vmul.f32 %v445, %v445
        %v510 = vmul.f32 %v446, %v446
        %v511 = vmul.f32 %v447, %v447
        %v512 = vmul.f32 %v448, %v448
        %v513 = vmul.f32 %v449, %v449
        %v514 = vmul.f32 %v450, %v450
        %v515 = vmul.f32 %v451, %v451
        %v516 = vmul.f32 %v452, %v452
        %v517 = vmul.f32 %v453, %v453
        %v518 = vmul.f32 %v454, %v454
        %v519 = vmul.f32 %v455, %v455
        %v520 = vmul.f32 %v456, %v456
        %v521 = vmul.f32 %v457, %v457
        %v522 = vmul.f32 %v458, %v458
        %v523 = vmul.f32 %v459, %v459
        %v524 = vmul.f32 %v460, %v460
        %v525 = vmul.f32 %v461, %v461
        %v526 = vmul.f32 %v462, %v462
        %v527 = vmul.f32 %v463, %v463
        %v528 = vmul.f32 %v464, %v464
        %v529 = vmul.f32 %v465, %v465
        %v530 = vmul.f32 %v466, %v466
        %v531 = vmul.f32 %v467, %v467
        %v532 = vmul.f32 %v468, %v468
        %v533 = vmul.f32 %v469, %v469
        %v534 = vmul.f32 %v470, %v470
        %v535 = vmul.f32 %v471, %v471
        %v536 = vmul.f32 %v472, %v408
        %v537 = vmul.f32 %v473, %v409
        %v538 = vmul.f32 %v474, %v410
        %v539 = vmul.f32 %v475, %v411
        %v540 = vmul.f32 %v476, %v412
        %v541 = vmul.f32 %v477, %v413
        %v542 = vmul.f32 %v478, %v414
        %v543 = vmul.f32 %v479, %v415
        %v544 = vmul.f32 %v480, %v416
        %v545 = vmul.f32 %v481, %v417
        %v546 = vmul.f32 %v482, %v418
        %v547 = vmul.f32 %v483, %v419
        %v548 = vmul.f32 %v484, %v420
        %v549 = vmul.f32 %v485, %v421
        %v550 = vmul.f32 %v486, %v422
        %v551 = vmul.f32 %v487, %v423
        %v552 = vmul.f32 %v488, %v424
        %v553 = vmul.f32 %v489, %v425
        %v554 = vmul.f32 %v490, %v426
        %v555 = vmul.f32 %v491, %v427
        %v556 = vmul.f32 %v492, %v428
        %v557 = vmul.f32 %v493, %v429
        %v558 = vmul.f32 %v494, %v430
        %v559 = vmul.f32 %v495, %v431
        %v560 = vmul.f32 %v496, %v432
        %v561 = vmul.f32 %v497, %v433
        %v562 = vmul.f32 %v498, %v434
        %v563 = vmul.f32 %v499, %v435
        %v564 = vmul.f32 %v500, %v436
        %v565 = vmul.f32 %v501, %v437
        %v566 = vmul.f32 %v502, %v438
        %v567 = vmul.f32 %v503, %v439
        %v568 = vmul.f32 %v504, %v440
        %v569 = vmul.f32 %v505, %v441
        %v570 = vmul.f32 %v506, %v442
        %v571 = vmul.f32 %v507, %v443
        %v572 = vmul.f32 %v508, %v444
        %v573 = vmul.f32 %v509, %v445
        %v574 = vmul.f32 %v510, %v446
        %v575 = vmul.f32 %v511, %v447
        %v576 = vmul.f32 %v512, %v448
        %v577 = vmul.f32 %v513, %v449
        %v578 = vmul.f32 %v514, %v450
        %v579 = vmul.f32 %v515, %v451
        %v580 = vmul.f32 %v516, %v452
        %v581 = vmul.f32 %v517, %v453
        %v582 = vmul.f32 %v518, %v454
        %v583 = vmul.f32 %v519, %v455
        %v584 = vmul.f32 %v520, %v456
        %v585 = vmul.f32 %v521, %v457
        %v586 = vmul.f32 %v522, %v458
        %v587 = vmul.f32 %v523, %v459
        %v588 = vmul.f32 %v524, %v460
        %v589 = vmul.f32 %v525, %v461
        %v590 = vmul.f32 %v526, %v462
        %v591 = vmul.f32 %v527, %v463
        %v592 = vmul.f32 %v528, %v464
        %v593 = vmul.f32 %v529, %v465
        %v594 = vmul.f32 %v530, %v466
        %v595 = vmul.f32 %v531, %v467
        %v596 = vmul.f32 %v532, %v468
        %v597 = vmul.f32 %v533, %v469
        %v598 = vmul.f32 %v534, %v470
        %v599 = vmul.f32 %v535, %v471
        %vm600 = vcmask 523264
        %v601 = vsel %vm600, %v536, 0.0
        %v602 = vsel %vm600, %v537, 0.0
        %v603 = vadd.f32 %v601, %v602
        %v604 = vsel %vm600, %v538, 0.0
        %v605 = vadd.f32 %v603, %v604
        %v606 = vsel %vm600, %v539, 0.0
        %v607 = vadd.f32 %v605, %v606
        %v608 = vsel %vm600, %v540, 0.0
        %v609 = vadd.f32 %v607, %v608
        %v610 = vsel %vm600, %v541, 0.0
        %v611 = vadd.f32 %v609, %v610
        %v612 = vsel %vm600, %v542, 0.0
        %v613 = vadd.f32 %v611, %v612
        %v614 = vsel %vm600, %v543, 0.0
        %v615 = vadd.f32 %v613, %v614
        %v616 = vrot.slane %v615, 4
        %v617 = vadd.f32 %v615, %v616
        %v618 = vrot.slane %v617, 2
        %v619 = vadd.f32 %v617, %v618
        %v620 = vrot.slane %v619, 1
        %v621 = vadd.f32 %v619, %v620
        %v622 = vsel %vm600, %v544, 0.0
        %v623 = vsel %vm600, %v545, 0.0
        %v624 = vadd.f32 %v622, %v623
        %v625 = vsel %vm600, %v546, 0.0
        %v626 = vadd.f32 %v624, %v625
        %v627 = vsel %vm600, %v547, 0.0
        %v628 = vadd.f32 %v626, %v627
        %v629 = vsel %vm600, %v548, 0.0
        %v630 = vadd.f32 %v628, %v629
        %v631 = vsel %vm600, %v549, 0.0
        %v632 = vadd.f32 %v630, %v631
        %v633 = vsel %vm600, %v550, 0.0
        %v634 = vadd.f32 %v632, %v633
        %v635 = vsel %vm600, %v551, 0.0
        %v636 = vadd.f32 %v634, %v635
        %v637 = vrot.slane %v636, 4
        %v638 = vadd.f32 %v636, %v637
        %v639 = vrot.slane %v638, 2
        %v640 = vadd.f32 %v638, %v639
        %v641 = vrot.slane %v640, 1
        %v642 = vadd.f32 %v640, %v641
        %v643 = vsel %vm600, %v552, 0.0
        %v644 = vsel %vm600, %v553, 0.0
        %v645 = vadd.f32 %v643, %v644
        %v646 = vsel %vm600, %v554, 0.0
        %v647 = vadd.f32 %v645, %v646
        %v648 = vsel %vm600, %v555, 0.0
        %v649 = vadd.f32 %v647, %v648
        %v650 = vsel %vm600, %v556, 0.0
        %v651 = vadd.f32 %v649, %v650
        %v652 = vsel %vm600, %v557, 0.0
        %v653 = vadd.f32 %v651, %v652
        %v654 = vsel %vm600, %v558, 0.0
        %v655 = vadd.f32 %v653, %v654
        %v656 = vsel %vm600, %v559, 0.0
        %v657 = vadd.f32 %v655, %v656
        %v658 = vrot.slane %v657, 4
        %v659 = vadd.f32 %v657, %v658
        %v660 = vrot.slane %v659, 2
        %v661 = vadd.f32 %v659, %v660
        %v662 = vrot.slane %v661, 1
        %v663 = vadd.f32 %v661, %v662
        %v664 = vsel %vm600, %v560, 0.0
        %v665 = vsel %vm600, %v561, 0.0
        %v666 = vadd.f32 %v664, %v665
        %v667 = vsel %vm600, %v562, 0.0
        %v668 = vadd.f32 %v666, %v667
        %v669 = vsel %vm600, %v563, 0.0
        %v670 = vadd.f32 %v668, %v669
        %v671 = vsel %vm600, %v564, 0.0
        %v672 = vadd.f32 %v670, %v671
        %v673 = vsel %vm600, %v565, 0.0
        %v674 = vadd.f32 %v672, %v673
        %v675 = vsel %vm600, %v566, 0.0
        %v676 = vadd.f32 %v674, %v675
        %v677 = vsel %vm600, %v567, 0.0
        %v678 = vadd.f32 %v676, %v677
        %v679 = vrot.slane %v678, 4
        %v680 = vadd.f32 %v678, %v679
        %v681 = vrot.slane %v680, 2
        %v682 = vadd.f32 %v680, %v681
        %v683 = vrot.slane %v682, 1
        %v684 = vadd.f32 %v682, %v683
        %v685 = vsel %vm600, %v568, 0.0
        %v686 = vsel %vm600, %v569, 0.0
        %v687 = vadd.f32 %v685, %v686
        %v688 = vsel %vm600, %v570, 0.0
        %v689 = vadd.f32 %v687, %v688
        %v690 = vsel %vm600, %v571, 0.0
        %v691 = vadd.f32 %v689, %v690
        %v692 = vsel %vm600, %v572, 0.0
        %v693 = vadd.f32 %v691, %v692
        %v694 = vsel %vm600, %v573, 0.0
        %v695 = vadd.f32 %v693, %v694
        %v696 = vsel %vm600, %v574, 0.0
        %v697 = vadd.f32 %v695, %v696
        %v698 = vsel %vm600, %v575, 0.0
        %v699 = vadd.f32 %v697, %v698
        %v700 = vrot.slane %v699, 4
        %v701 = vadd.f32 %v699, %v700
        %v702 = vrot.slane %v701, 2
        %v703 = vadd.f32 %v701, %v702
        %v704 = vrot.slane %v703, 1
        %v705 = vadd.f32 %v703, %v704
        %v706 = vsel %vm600, %v576, 0.0
        %v707 = vsel %vm600, %v577, 0.0
        %v708 = vadd.f32 %v706, %v707
        %v709 = vsel %vm600, %v578, 0.0
        %v710 = vadd.f32 %v708, %v709
        %v711 = vsel %vm600, %v579, 0.0
        %v712 = vadd.f32 %v710, %v711
        %v713 = vsel %vm600, %v580, 0.0
        %v714 = vadd.f32 %v712, %v713
        %v715 = vsel %vm600, %v581, 0.0
        %v716 = vadd.f32 %v714, %v715
        %v717 = vsel %vm600, %v582, 0.0
        %v718 = vadd.f32 %v716, %v717
        %v719 = vsel %vm600, %v583, 0.0
        %v720 = vadd.f32 %v718, %v719
        %v721 = vrot.slane %v720, 4
        %v722 = vadd.f32 %v720, %v721
        %v723 = vrot.slane %v722, 2
        %v724 = vadd.f32 %v722, %v723
        %v725 = vrot.slane %v724, 1
        %v726 = vadd.f32 %v724, %v725
        %v727 = vsel %vm600, %v584, 0.0
        %v728 = vsel %vm600, %v585, 0.0
        %v729 = vadd.f32 %v727, %v728
        %v730 = vsel %vm600, %v586, 0.0
        %v731 = vadd.f32 %v729, %v730
        %v732 = vsel %vm600, %v587, 0.0
        %v733 = vadd.f32 %v731, %v732
        %v734 = vsel %vm600, %v588, 0.0
        %v735 = vadd.f32 %v733, %v734
        %v736 = vsel %vm600, %v589, 0.0
        %v737 = vadd.f32 %v735, %v736
        %v738 = vsel %vm600, %v590, 0.0
        %v739 = vadd.f32 %v737, %v738
        %v740 = vsel %vm600, %v591, 0.0
        %v741 = vadd.f32 %v739, %v740
        %v742 = vrot.slane %v741, 4
        %v743 = vadd.f32 %v741, %v742
        %v744 = vrot.slane %v743, 2
        %v745 = vadd.f32 %v743, %v744
        %v746 = vrot.slane %v745, 1
        %v747 = vadd.f32 %v745, %v746
        %v748 = vsel %vm600, %v592, 0.0
        %v749 = vsel %vm600, %v593, 0.0
        %v750 = vadd.f32 %v748, %v749
        %v751 = vsel %vm600, %v594, 0.0
        %v752 = vadd.f32 %v750, %v751
        %v753 = vsel %vm600, %v595, 0.0
        %v754 = vadd.f32 %v752, %v753
        %v755 = vsel %vm600, %v596, 0.0
        %v756 = vadd.f32 %v754, %v755
        %v757 = vsel %vm600, %v597, 0.0
        %v758 = vadd.f32 %v756, %v757
        %v759 = vsel %vm600, %v598, 0.0
        %v760 = vadd.f32 %v758, %v759
        %v761 = vsel %vm600, %v599, 0.0
        %v762 = vadd.f32 %v760, %v761
        %v763 = vrot.slane %v762, 4
        %v764 = vadd.f32 %v762, %v763
        %v765 = vrot.slane %v764, 2
        %v766 = vadd.f32 %v764, %v765
        %v767 = vrot.slane %v766, 1
        %v768 = vadd.f32 %v766, %v767
        %v769 = vrcp.pop 64.0
        %v770 = vmul.f32 64.0, %v769
        %v771 = vsub.f32 1.0, %v770
        %v772 = vmul.f32 %v769, %v771
        %v773 = vadd.f32 %v769, %v772
        %vm774 = vweird.f32 %v769
        %v775 = vsel %vm774, %v769, %v773
        %v776 = vmul.f32 %v621, %v775
        %v777 = vmul.f32 %v642, %v775
        %v778 = vmul.f32 %v663, %v775
        %v779 = vmul.f32 %v684, %v775
        %v780 = vmul.f32 %v705, %v775
        %v781 = vmul.f32 %v726, %v775
        %v782 = vmul.f32 %v747, %v775
        %v783 = vmul.f32 %v768, %v775
        %v784 = vpow.f32 %v776, 0.33333334
        %v785 = vpow.f32 %v777, 0.33333334
        %v786 = vpow.f32 %v778, 0.33333334
        %v787 = vpow.f32 %v779, 0.33333334
        %v788 = vpow.f32 %v780, 0.33333334
        %v789 = vpow.f32 %v781, 0.33333334
        %v790 = vpow.f32 %v782, 0.33333334
        %v791 = vpow.f32 %v783, 0.33333334
        %v792 = vld [vmem:[#allocation5] sm:$0xff]
        %v793 = vld [vmem:[#allocation5 + $0x8] sm:$0xff]
        %v794 = vld [vmem:[#allocation5 + $0x10] sm:$0xff]
        %v795 = vld [vmem:[#allocation5 + $0x18] sm:$0xff]
        %v796 = vld [vmem:[#allocation5 + $0x20] sm:$0xff]
        %v797 = vld [vmem:[#allocation5 + $0x28] sm:$0xff]
        %v798 = vld [vmem:[#allocation5 + $0x30] sm:$0xff]
        %v799 = vld [vmem:[#allocation5 + $0x38] sm:$0xff]
        %v800 = vld [vmem:[%s2] sm:$0x1]
        %v802 = vperm.slane %v800, 0
        %vm812 = vcmask 1041409
        %v813 = vsel %vm812, %v785, %v784
        %vm814 = vcmask 1042434
        %v815 = vsel %vm814, %v786, %v813
        %vm816 = vcmask 1043459
        %v817 = vsel %vm816, %v787, %v815
        %vm818 = vcmask 1044484
        %v819 = vsel %vm818, %v788, %v817
        %vm820 = vcmask 1045509
        %v821 = vsel %vm820, %v789, %v819
        %vm822 = vcmask 1046534
        %v823 = vsel %vm822, %v790, %v821
        %vm824 = vcmask 1047559
        %v825 = vsel %vm824, %v791, %v823
        %v826 = vsel %vm600, %v825, 0
        %828 = vmatpush.msra.mxu0 0.0
        %829 = vmatpush.msra.mxu0 0.0
        %830 = vmatpush.msra.mxu0 0.0
        %831 = vmatpush.msra.mxu0 0.0
        %832 = vmatpush.msra.mxu0 0.0
        %833 = vmatpush.msra.mxu0 0.0
        %834 = vmatpush.msra.mxu0 0.0
        %835 = vmatpush.msra.mxu0 0.0
        %836 = vmatpush.msra.mxu0 %v799
        %837 = vmatpush.msra.mxu0 %v798
        %838 = vmatpush.msra.mxu0 %v797
        %839 = vmatpush.msra.mxu0 %v796
        %840 = vmatpush.msra.mxu0 %v795
        %841 = vmatpush.msra.mxu0 %v794
        %842 = vmatpush.msra.mxu0 %v793
        %843 = vmatpush.msra.mxu0 %v792
        %844 = vmatmul.f32.gmra.mxu0 %v826
        %v845 = vpop.f32.mrf.mxu0
        %v846 = vadd.f32 %v802, %v845
        %847 = vdwg.mxu0
        %v848 = vmul.f32 %v846, 0.01
        %v849 = vmax.f32 %v846, %v848
        %v850 = vld [vmem:[#allocation7] sm:$0xff]
        %v851 = vld [vmem:[#allocation7 + $0x8] sm:$0xff]
        %v852 = vld [vmem:[#allocation7 + $0x10] sm:$0xff]
        %v853 = vld [vmem:[#allocation7 + $0x18] sm:$0xff]
        %v854 = vld [vmem:[#allocation7 + $0x20] sm:$0xff]
        %v855 = vld [vmem:[#allocation7 + $0x28] sm:$0xff]
        %v856 = vld [vmem:[#allocation7 + $0x30] sm:$0xff]
        %v857 = vld [vmem:[#allocation7 + $0x38] sm:$0xff]
        %v858 = vld [vmem:[#allocation7 + $0x40] sm:$0xff]
        %v859 = vld [vmem:[#allocation7 + $0x48] sm:$0xff]
        %v860 = vld [vmem:[#allocation7 + $0x50] sm:$0xff]
        %v861 = vld [vmem:[#allocation7 + $0x58] sm:$0xff]
        %v862 = vld [vmem:[#allocation7 + $0x60] sm:$0xff]
        %v863 = vld [vmem:[#allocation7 + $0x68] sm:$0xff]
        %v864 = vld [vmem:[#allocation7 + $0x70] sm:$0xff]
        %v865 = vld [vmem:[#allocation7 + $0x78] sm:$0xff]
        %v866 = vld [vmem:[%s4] sm:$0x1]
        %v868 = vperm.slane %v866, 0
        %870 = vmatpush.msra.mxu0 %v865
        %871 = vmatpush.msra.mxu0 %v864
        %872 = vmatpush.msra.mxu0 %v863
        %873 = vmatpush.msra.mxu0 %v862
        %874 = vmatpush.msra.mxu0 %v861
        %875 = vmatpush.msra.mxu0 %v860
        %876 = vmatpush.msra.mxu0 %v859
        %877 = vmatpush.msra.mxu0 %v858
        %878 = vmatpush.msra.mxu0 %v857
        %879 = vmatpush.msra.mxu0 %v856
        %880 = vmatpush.msra.mxu0 %v855
        %881 = vmatpush.msra.mxu0 %v854
        %882 = vmatpush.msra.mxu0 %v853
        %883 = vmatpush.msra.mxu0 %v852
        %884 = vmatpush.msra.mxu0 %v851
        %885 = vmatpush.msra.mxu0 %v850
        %886 = vmatmul.f32.gmra.mxu0 %v849
        %v887 = vpop.f32.mrf.mxu0
        %v888 = vadd.f32 %v868, %v887
        %889 = vdwg.mxu0
        %890 = vst [vmem:[%s278] sm:$0xff] %v888
        %s891 = sand.u32 %s141, 1
        %s892 = scalar_lea.sflag [#allocation4], %s891
        %s893 = sand.u32 %s141, 1
        %s894 = smul.addr %s893, 8
        %s895 = scalar_lea.vmem [#allocation8], %s894
        // Predicated region
        $region53: #{tpu_custom_call.1} parent=39 // pred_check
          %p896 = pneg %p151
        $region54: #{tpu_custom_call.1} parent=39 // pred_check_branch
          %898 = sbr.rel (%p896) target = $region56
        $region55: #{tpu_custom_call.1} parent=39 // pred_region
          %900 = vsyncadd %s892, 0
          %s901 = smul.addr %s23, 8
          %s902 = scalar_lea.hbm %s5, %s901
          %s904 = sshll.u32 %s895, 4
          %s905 = int_to_ptr.vmem [resolvable:$true] %s904
          %s906 = sshll.u32 %s902, 4
          %s907 = int_to_ptr.hbm [resolvable:$true] %s906
          %909 = dma.vmem_to_hbm [thread:$0]  %s905, 128, %s907, %s892
        $region56: #{tpu_custom_call.1} parent=39 // pred_fallthru
          _
      $region40: #{tpu_custom_call.1} parent=5 // pred_fallthru
        _
      %p910 = scmp.le.s32.totalorder 2, %s18
      // Predicated region
      $region57: #{tpu_custom_call.1} parent=5 // pred_check
        %p911 = pneg %p910
      $region58: #{tpu_custom_call.1} parent=5 // pred_check_branch
        %913 = sbr.rel (%p911) target = $region60
      $region59: #{tpu_custom_call.1} parent=5 // pred_region
        %s914 = ssub.s32 %s18, 2
        // Predicated region
        $region61: #{tpu_custom_call.1} parent=59 // pred_check
          %p915 = pneg %p157
        $region62: #{tpu_custom_call.1} parent=59 // pred_check_branch
          %917 = sbr.rel (%p915) target = $region64
        $region63: #{tpu_custom_call.1} parent=59 // pred_region
          %s918 = sand.u32 %s142, 1
          %s919 = scalar_lea.sflag [#allocation4], %s918
          %s920 = sand.u32 %s142, 1
          %s921 = smul.addr %s920, 8
          %s922 = scalar_lea.vmem [#allocation8], %s921
          %924 = dma.done %s919, 128
        $region64: #{tpu_custom_call.1} parent=59 // pred_fallthru
          _
      $region60: #{tpu_custom_call.1} parent=5 // pred_fallthru
        _
    $region6: #{tpu_custom_call.1} parent=1 // loop_footer
      %s22 = sadd.s32 1, %s18
    $region7: #{tpu_custom_call.1} parent=1 // loop_footer_branch
      %17 = sbr.rel target = $region3
    $region8: #{tpu_custom_call.1} parent=1 // loop_exit
      _
    %925 = vsyncpa [#allocation3], 1
    %s926 = scalar_lea.sflag [#allocation3], 1
    %927 = vsyncpa %s926, 1
    %928 = vsyncpa [#allocation6], 1
    %929 = vsyncpa [#allocation4], 1
    %s930 = scalar_lea.sflag [#allocation4], 1
    %931 = vsyncpa %s930, 1

// kernel: tpu_custom_call.1
$region0: #{tpu_custom_call.1}
  #allocation0 [shape = 'u32[]', space=smem, size = 0x4, offset = 0x4, fixed_abs, tag = 'smem constant byte address 0x4 - core index']
  #allocation1 [shape = 'u32[72,128]{1,0:T(1,128)}', space=vmem, size = 0x9000, scoped, tag = 'internal scratch']
  %s0 = inlined_call_operand.hbm [shape: bf16[16,64,64], index: 0, kind: input, shape index: {}]
  %s1 = inlined_call_operand.hbm [shape: f32[64,128], index: 1, kind: input, shape index: {}]
  %s2 = inlined_call_operand.vmem [shape: f32[1,128], index: 2, kind: input, shape index: {}]
  %s3 = inlined_call_operand.hbm [shape: f32[128,128], index: 3, kind: input, shape index: {}]
  %s4 = inlined_call_operand.vmem [shape: f32[1,128], index: 4, kind: input, shape index: {}]
  %s5 = inlined_call_operand.hbm [shape: f32[16,128], index: 5, kind: output, shape index: {}]
  %s6 = sld [smem:[#allocation0]]
  $region65: #{tpu_custom_call.1} parent=0
    _
  %s8 = ssub.s32 1, %s6
  %s9 = scalar_select 0, %s8, %s6
  $region1: #{tpu_custom_call.1} parent=0
    #allocation2 [shape = 'u8[262144]{0}', space=vmem, size = 0x40000, scoped, tag = 'input window, operand 0']
    #allocation3 [shape = 's32[2]{0}', space=sflag, size = 0x8, scoped, tag = 'scoped memory for tpu_custom_call.1']
    #allocation4 [shape = 's32[2]{0}', space=sflag, size = 0x8, scoped, tag = 'scoped memory for tpu_custom_call.1']
    #allocation5 [shape = 'u8[32768]{0}', space=vmem, size = 0x8000, scoped, tag = 'input window, operand 1, single buffered']
    #allocation6 [shape = 's32[1]{0}', space=sflag, size = 0x4, scoped, tag = 'scoped memory for tpu_custom_call.1']
    #allocation7 [shape = 'u8[65536]{0}', space=vmem, size = 0x10000, scoped, tag = 'input window, operand 3, single buffered']
    #allocation8 [shape = 'u8[8192]{0}', space=vmem, size = 0x2000, scoped, tag = 'output window, operand 0']
    %10 = vsyncpa [#allocation3], 0
    %s11 = scalar_lea.sflag [#allocation3], 1
    %12 = vsyncpa %s11, 0
    %13 = vsyncpa [#allocation6], 0
    %14 = vsyncpa [#allocation4], 0
    %s15 = scalar_lea.sflag [#allocation4], 1
    %16 = vsyncpa %s15, 0
    loop: start=0, step=1, limit=4
    $region2: #{tpu_custom_call.1} parent=1 // loop_pre_header
      _
    $region3: #{tpu_custom_call.1} parent=1 // loop_header
      %s18 = sphi 0, %s22
      %p19 = scmp.ge.s32.totalorder %s18, 4
      %s28 = sphi 0, %s30
      %s31 = sphi 0, %s28
      %s32 = sphi 0, %s31
      %s48 = sphi 0, %s32
      %s52 = sphi 0, %s52
      %s54 = sphi 0, %s52
      %s55 = sphi 0, %s54
      %s69 = sphi 0, %s55
      %s73 = sphi 0, %s73
      %s75 = sphi 0, %s73
      %s76 = sphi 0, %s75
      %s90 = sphi 0, %s76
      %s94 = sphi 0, %s94
      %s96 = sphi 0, %s94
      %s97 = sphi 0, %s96
      %s111 = sphi 0, %s97
      %s115 = sphi 0, %s115
      %s117 = sphi 0, %s115
      %s118 = sphi 0, %s117
      %s132 = sphi 0, %s118
      %s138 = sphi 0, %s140
      %s141 = sphi 0, %s138
      %s142 = sphi 0, %s141
      %s158 = sphi 0, %s142
    $region4: #{tpu_custom_call.1} parent=1 // loop_header_branch
      %21 = sbr.rel (%p19) target = $region8
    $region5: #{tpu_custom_call.1} parent=1 // loop_body
      %s23 = ssub.s32 %s18, 1
      %s24 = ssub.s32 %s18, 2
      %s25 = sadd.s32 %s18, 1
      %s26 = ssub.s32 %s18, %s25
      %p27 = scmp.eq.s32.totalorder %s26, 0
      %s29 = sadd.s32 %s28, 1
      %s30 = scalar_select %p27, %s28, %s29
      %p33 = pneg %p27
      %p34 = scmp.eq.s32.totalorder %s18, 1
      %p35 = por %p33, %p34
      %p36 = scmp.ne.s32.totalorder %s28, %s31
      %p37 = scmp.eq.s32.totalorder %s18, 0
      %p38 = por %p36, %p37
      %p39 = scmp.ne.s32.totalorder %s28, %s31
      %p40 = scmp.eq.s32.totalorder %s23, 1
      %p41 = por %p39, %p40
      %p42 = scmp.ne.s32.totalorder %s31, %s32
      %p43 = scmp.eq.s32.totalorder %s23, 0
      %p44 = por %p42, %p43
      %p45 = scmp.ne.s32.totalorder %s31, %s32
      %p46 = scmp.eq.s32.totalorder %s24, 1
      %p47 = por %p45, %p46
      %p49 = scmp.ne.s32.totalorder %s32, %s48
      %p50 = scmp.eq.s32.totalorder %s24, 0
      %p51 = por %p49, %p50
      %s53 = sadd.s32 %s52, 1
      %p56 = scmp.eq.s32.totalorder %s18, 1
      %p57 = scmp.ne.s32.totalorder %s52, %s54
      %p58 = scmp.eq.s32.totalorder %s18, 0
      %p59 = por %p57, %p58
      %p60 = scmp.ne.s32.totalorder %s52, %s54
      %p61 = scmp.eq.s32.totalorder %s23, 1
      %p62 = por %p60, %p61
      %p63 = scmp.ne.s32.totalorder %s54, %s55
      %p64 = scmp.eq.s32.totalorder %s23, 0
      %p65 = por %p63, %p64
      %p66 = scmp.ne.s32.totalorder %s54, %s55
      %p67 = scmp.eq.s32.totalorder %s24, 1
      %p68 = por %p66, %p67
      %p70 = scmp.ne.s32.totalorder %s55, %s69
      %p71 = scmp.eq.s32.totalorder %s24, 0
      %p72 = por %p70, %p71
      %s74 = sadd.s32 %s73, 1
      %p77 = scmp.eq.s32.totalorder %s18, 1
      %p78 = scmp.ne.s32.totalorder %s73, %s75
      %p79 = scmp.eq.s32.totalorder %s18, 0
      %p80 = por %p78, %p79
      %p81 = scmp.ne.s32.totalorder %s73, %s75
      %p82 = scmp.eq.s32.totalorder %s23, 1
      %p83 = por %p81, %p82
      %p84 = scmp.ne.s32.totalorder %s75, %s76
      %p85 = scmp.eq.s32.totalorder %s23, 0
      %p86 = por %p84, %p85
      %p87 = scmp.ne.s32.totalorder %s75, %s76
      %p88 = scmp.eq.s32.totalorder %s24, 1
      %p89 = por %p87, %p88
      %p91 = scmp.ne.s32.totalorder %s76, %s90
      %p92 = scmp.eq.s32.totalorder %s24, 0
      %p93 = por %p91, %p92
      %s95 = sadd.s32 %s94, 1
      %p98 = scmp.eq.s32.totalorder %s18, 1
      %p99 = scmp.ne.s32.totalorder %s94, %s96
      %p100 = scmp.eq.s32.totalorder %s18, 0
      %p101 = por %p99, %p100
      %p102 = scmp.ne.s32.totalorder %s94, %s96
      %p103 = scmp.eq.s32.totalorder %s23, 1
      %p104 = por %p102, %p103
      %p105 = scmp.ne.s32.totalorder %s96, %s97
      %p106 = scmp.eq.s32.totalorder %s23, 0
      %p107 = por %p105, %p106
      %p108 = scmp.ne.s32.totalorder %s96, %s97
      %p109 = scmp.eq.s32.totalorder %s24, 1
      %p110 = por %p108, %p109
      %p112 = scmp.ne.s32.totalorder %s97, %s111
      %p113 = scmp.eq.s32.totalorder %s24, 0
      %p114 = por %p112, %p113
      %s116 = sadd.s32 %s115, 1
      %p119 = scmp.eq.s32.totalorder %s18, 1
      %p120 = scmp.ne.s32.totalorder %s115, %s117
      %p121 = scmp.eq.s32.totalorder %s18, 0
      %p122 = por %p120, %p121
      %p123 = scmp.ne.s32.totalorder %s115, %s117
      %p124 = scmp.eq.s32.totalorder %s23, 1
      %p125 = por %p123, %p124
      %p126 = scmp.ne.s32.totalorder %s117, %s118
      %p127 = scmp.eq.s32.totalorder %s23, 0
      %p128 = por %p126, %p127
      %p129 = scmp.ne.s32.totalorder %s117, %s118
      %p130 = scmp.eq.s32.totalorder %s24, 1
      %p131 = por %p129, %p130
      %p133 = scmp.ne.s32.totalorder %s118, %s132
      %p134 = scmp.eq.s32.totalorder %s24, 0
      %p135 = por %p133, %p134
      %s136 = ssub.s32 %s18, %s25
      %p137 = scmp.eq.s32.totalorder %s136, 0
      %s139 = sadd.s32 %s138, 1
      %s140 = scalar_select %p137, %s138, %s139
      %p143 = pneg %p137
      %p144 = scmp.eq.s32.totalorder %s18, 1
      %p145 = por %p143, %p144
      %p146 = scmp.ne.s32.totalorder %s138, %s141
      %p147 = scmp.eq.s32.totalorder %s18, 0
      %p148 = por %p146, %p147
      %p149 = scmp.ne.s32.totalorder %s138, %s141
      %p150 = scmp.eq.s32.totalorder %s23, 1
      %p151 = por %p149, %p150
      %p152 = scmp.ne.s32.totalorder %s141, %s142
      %p153 = scmp.eq.s32.totalorder %s23, 0
      %p154 = por %p152, %p153
      %p155 = scmp.ne.s32.totalorder %s141, %s142
      %p156 = scmp.eq.s32.totalorder %s24, 1
      %p157 = por %p155, %p156
      %p159 = scmp.ne.s32.totalorder %s142, %s158
      %p160 = scmp.eq.s32.totalorder %s24, 0
      %p161 = por %p159, %p160
      %p162 = scmp.le.s32.totalorder 1, %s18
      %p163 = scmp.lt.s32.totalorder %s18, 3
      %p164 = pnand %p162, %p163
      %p165 = pneg %p164
      // Predicated region
      $region9: #{tpu_custom_call.1} parent=5 // pred_check
        _
      $region10: #{tpu_custom_call.1} parent=5 // pred_check_branch
        %167 = sbr.rel (%p164) target = $region12
      $region11: #{tpu_custom_call.1} parent=5 // pred_region
        %s168 = ssub.s32 %s18, 1
        // Predicated region
        $region13: #{tpu_custom_call.1} parent=11 // pred_check
          %p169 = pneg %p65
        $region14: #{tpu_custom_call.1} parent=11 // pred_check_branch
          %171 = sbr.rel (%p169) target = $region16
        $region15: #{tpu_custom_call.1} parent=11 // pred_region
          %173 = vsyncadd [#allocation6], 0
          %s174 = sshll.u32 %s1, 4
          %s175 = int_to_ptr.hbm [resolvable:$true] %s174
          %s176 = sshll.u32 [#allocation5], 4
          %s177 = int_to_ptr.vmem [resolvable:$true] %s176
          %182 = dma.hbm_to_vmem [thread:$0]  %s175, 1024, %s177, [#allocation6], 128, 128, 8
        $region16: #{tpu_custom_call.1} parent=11 // pred_fallthru
          _
        // Predicated region
        $region17: #{tpu_custom_call.1} parent=11 // pred_check
          %p183 = pneg %p86
        $region18: #{tpu_custom_call.1} parent=11 // pred_check_branch
          %185 = sbr.rel (%p183) target = $region20
        $region19: #{tpu_custom_call.1} parent=11 // pred_region
          _
        $region20: #{tpu_custom_call.1} parent=11 // pred_fallthru
          _
        // Predicated region
        $region21: #{tpu_custom_call.1} parent=11 // pred_check
          %p186 = pneg %p107
        $region22: #{tpu_custom_call.1} parent=11 // pred_check_branch
          %188 = sbr.rel (%p186) target = $region24
        $region23: #{tpu_custom_call.1} parent=11 // pred_region
          %190 = vsyncadd [#allocation6], 0
          %s191 = sshll.u32 %s3, 4
          %s192 = int_to_ptr.hbm [resolvable:$true] %s191
          %s193 = sshll.u32 [#allocation7], 4
          %s194 = int_to_ptr.vmem [resolvable:$true] %s193
          %199 = dma.hbm_to_vmem [thread:$0]  %s192, 2048, %s194, [#allocation6], 128, 128, 8
        $region24: #{tpu_custom_call.1} parent=11 // pred_fallthru
          _
        // Predicated region
        $region25: #{tpu_custom_call.1} parent=11 // pred_check
          %p200 = pneg %p128
        $region26: #{tpu_custom_call.1} parent=11 // pred_check_branch
          %202 = sbr.rel (%p200) target = $region28
        $region27: #{tpu_custom_call.1} parent=11 // pred_region
          _
        $region28: #{tpu_custom_call.1} parent=11 // pred_fallthru
          _
      $region12: #{tpu_custom_call.1} parent=5 // pred_fallthru
        _
      %p203 = scmp.lt.s32.totalorder %s18, 2
      // Predicated region
      $region29: #{tpu_custom_call.1} parent=5 // pred_check
        %p204 = pneg %p203
      $region30: #{tpu_custom_call.1} parent=5 // pred_check_branch
        %206 = sbr.rel (%p204) target = $region32
      $region31: #{tpu_custom_call.1} parent=5 // pred_region
        // Predicated region
        $region33: #{tpu_custom_call.1} parent=31 // pred_check
          %p207 = pneg %p38
        $region34: #{tpu_custom_call.1} parent=31 // pred_check_branch
          %209 = sbr.rel (%p207) target = $region36
        $region35: #{tpu_custom_call.1} parent=31 // pred_region
          %s210 = sand.u32 %s28, 1
          %s211 = scalar_lea.sflag [#allocation3], %s210
          %s212 = sand.u32 %s28, 1
          %s213 = smul.addr %s212, 256
          %s214 = scalar_lea.vmem [#allocation2], %s213
          %s215 = smul.u32 8, %s18
          %217 = vsyncadd %s211, 0
          %s218 = smul.addr %s215, 8
          %s219 = smul.addr %s218, 4
          %s220 = scalar_lea.hbm %s0, %s219
          %s221 = sshll.u32 %s220, 4
          %s222 = int_to_ptr.hbm [resolvable:$true] %s221
          %s223 = sshll.u32 %s214, 4
          %s224 = int_to_ptr.vmem [resolvable:$true] %s223
          %229 = dma.hbm_to_vmem [thread:$0]  %s222, 4096, %s224, %s211, 64, 64, 4
        $region36: #{tpu_custom_call.1} parent=31 // pred_fallthru
          _
      $region32: #{tpu_custom_call.1} parent=5 // pred_fallthru
        _
      %p230 = scmp.le.s32.totalorder 1, %s18
      %p231 = scmp.lt.s32.totalorder %s18, 3
      %p232 = pnand %p230, %p231
      %p233 = pneg %p232
      // Predicated region
      $region37: #{tpu_custom_call.1} parent=5 // pred_check
        _
      $region38: #{tpu_custom_call.1} parent=5 // pred_check_branch
        %235 = sbr.rel (%p232) target = $region40
      $region39: #{tpu_custom_call.1} parent=5 // pred_region
        %s236 = ssub.s32 %s18, 1
        %s237 = sand.u32 %s31, 1
        %s238 = scalar_lea.sflag [#allocation3], %s237
        %s239 = sand.u32 %s31, 1
        %s240 = smul.addr %s239, 256
        %s241 = scalar_lea.vmem [#allocation2], %s240
        // Predicated region
        $region41: #{tpu_custom_call.1} parent=39 // pred_check
          %p242 = pneg %p44
        $region42: #{tpu_custom_call.1} parent=39 // pred_check_branch
          %244 = sbr.rel (%p242) target = $region44
        $region43: #{tpu_custom_call.1} parent=39 // pred_region
          %246 = dma.done %s238, 4096
        $region44: #{tpu_custom_call.1} parent=39 // pred_fallthru
          _
        // Predicated region
        $region45: #{tpu_custom_call.1} parent=39 // pred_check
          %p247 = pneg %p65
        $region46: #{tpu_custom_call.1} parent=39 // pred_check_branch
          %249 = sbr.rel (%p247) target = $region48
        $region47: #{tpu_custom_call.1} parent=39 // pred_region
          %251 = dma.done [#allocation6], 1024
        $region48: #{tpu_custom_call.1} parent=39 // pred_fallthru
          _
        // Predicated region
        $region49: #{tpu_custom_call.1} parent=39 // pred_check
          %p252 = pneg %p107
        $region50: #{tpu_custom_call.1} parent=39 // pred_check_branch
          %254 = sbr.rel (%p252) target = $region52
        $region51: #{tpu_custom_call.1} parent=39 // pred_region
          %256 = dma.done [#allocation6], 2048
        $region52: #{tpu_custom_call.1} parent=39 // pred_fallthru
          _
        %s257 = sand.u32 %s31, 1
        %s258 = scalar_lea.sflag [#allocation3], %s257
        %s259 = sand.u32 %s31, 1
        %s260 = smul.addr %s259, 256
        %s261 = scalar_lea.vmem [#allocation2], %s260
        %p262 = pneg %p44
        %p263 = pneg %p41
        %p264 = pneg %p65
        %p265 = pneg %p62
        %p266 = pneg %p86
        %p267 = pneg %p83
        %p268 = pneg %p107
        %p269 = pneg %p104
        %p270 = pneg %p128
        %p271 = pneg %p125
        %p272 = pneg %p154
        %p273 = pneg %p151
        %s274 = sand.u32 %s141, 1
        %s275 = scalar_lea.sflag [#allocation4], %s274
        %s276 = sand.u32 %s141, 1
        %s277 = smul.addr %s276, 8
        %s278 = scalar_lea.vmem [#allocation8], %s277
        %s279 = smul.u32 8, %s23
        %v280 = vld [vmem:[%s241] sm:$0xf]
        %v281 = vld [vmem:[%s241 + $0x4] sm:$0xf]
        %v282 = vld [vmem:[%s241 + $0x8] sm:$0xf]
        %v283 = vld [vmem:[%s241 + $0xc] sm:$0xf]
        %v284 = vld [vmem:[%s241 + $0x10] sm:$0xf]
        %v285 = vld [vmem:[%s241 + $0x14] sm:$0xf]
        %v286 = vld [vmem:[%s241 + $0x18] sm:$0xf]
        %v287 = vld [vmem:[%s241 + $0x1c] sm:$0xf]
        %v288 = vld [vmem:[%s241 + $0x20] sm:$0xf]
        %v289 = vld [vmem:[%s241 + $0x24] sm:$0xf]
        %v290 = vld [vmem:[%s241 + $0x28] sm:$0xf]
        %v291 = vld [vmem:[%s241 + $0x2c] sm:$0xf]
        %v292 = vld [vmem:[%s241 + $0x30] sm:$0xf]
        %v293 = vld [vmem:[%s241 + $0x34] sm:$0xf]
        %v294 = vld [vmem:[%s241 + $0x38] sm:$0xf]
        %v295 = vld [vmem:[%s241 + $0x3c] sm:$0xf]
        %v296 = vld [vmem:[%s241 + $0x40] sm:$0xf]
        %v297 = vld [vmem:[%s241 + $0x44] sm:$0xf]
        %v298 = vld [vmem:[%s241 + $0x48] sm:$0xf]
        %v299 = vld [vmem:[%s241 + $0x4c] sm:$0xf]
        %v300 = vld [vmem:[%s241 + $0x50] sm:$0xf]
        %v301 = vld [vmem:[%s241 + $0x54] sm:$0xf]
        %v302 = vld [vmem:[%s241 + $0x58] sm:$0xf]
        %v303 = vld [vmem:[%s241 + $0x5c] sm:$0xf]
        %v304 = vld [vmem:[%s241 + $0x60] sm:$0xf]
        %v305 = vld [vmem:[%s241 + $0x64] sm:$0xf]
        %v306 = vld [vmem:[%s241 + $0x68] sm:$0xf]
        %v307 = vld [vmem:[%s241 + $0x6c] sm:$0xf]
        %v308 = vld [vmem:[%s241 + $0x70] sm:$0xf]
        %v309 = vld [vmem:[%s241 + $0x74] sm:$0xf]
        %v310 = vld [vmem:[%s241 + $0x78] sm:$0xf]
        %v311 = vld [vmem:[%s241 + $0x7c] sm:$0xf]
        %v312 = vld [vmem:[%s241 + $0x80] sm:$0xf]
        %v313 = vld [vmem:[%s241 + $0x84] sm:$0xf]
        %v314 = vld [vmem:[%s241 + $0x88] sm:$0xf]
        %v315 = vld [vmem:[%s241 + $0x8c] sm:$0xf]
        %v316 = vld [vmem:[%s241 + $0x90] sm:$0xf]
        %v317 = vld [vmem:[%s241 + $0x94] sm:$0xf]
        %v318 = vld [vmem:[%s241 + $0x98] sm:$0xf]
        %v319 = vld [vmem:[%s241 + $0x9c] sm:$0xf]
        %v320 = vld [vmem:[%s241 + $0xa0] sm:$0xf]
        %v321 = vld [vmem:[%s241 + $0xa4] sm:$0xf]
        %v322 = vld [vmem:[%s241 + $0xa8] sm:$0xf]
        %v323 = vld [vmem:[%s241 + $0xac] sm:$0xf]
        %v324 = vld [vmem:[%s241 + $0xb0] sm:$0xf]
        %v325 = vld [vmem:[%s241 + $0xb4] sm:$0xf]
        %v326 = vld [vmem:[%s241 + $0xb8] sm:$0xf]
        %v327 = vld [vmem:[%s241 + $0xbc] sm:$0xf]
        %v328 = vld [vmem:[%s241 + $0xc0] sm:$0xf]
        %v329 = vld [vmem:[%s241 + $0xc4] sm:$0xf]
        %v330 = vld [vmem:[%s241 + $0xc8] sm:$0xf]
        %v331 = vld [vmem:[%s241 + $0xcc] sm:$0xf]
        %v332 = vld [vmem:[%s241 + $0xd0] sm:$0xf]
        %v333 = vld [vmem:[%s241 + $0xd4] sm:$0xf]
        %v334 = vld [vmem:[%s241 + $0xd8] sm:$0xf]
        %v335 = vld [vmem:[%s241 + $0xdc] sm:$0xf]
        %v336 = vld [vmem:[%s241 + $0xe0] sm:$0xf]
        %v337 = vld [vmem:[%s241 + $0xe4] sm:$0xf]
        %v338 = vld [vmem:[%s241 + $0xe8] sm:$0xf]
        %v339 = vld [vmem:[%s241 + $0xec] sm:$0xf]
        %v340 = vld [vmem:[%s241 + $0xf0] sm:$0xf]
        %v341 = vld [vmem:[%s241 + $0xf4] sm:$0xf]
        %v342 = vld [vmem:[%s241 + $0xf8] sm:$0xf]
        %v343 = vld [vmem:[%s241 + $0xfc] sm:$0xf]
        %v344 = vunpack.c.l.bf16 %v280
        %v345 = vunpack.c.l.bf16 %v281
        %v346 = vunpack.c.l.bf16 %v282
        %v347 = vunpack.c.l.bf16 %v283
        %v348 = vunpack.c.l.bf16 %v284
        %v349 = vunpack.c.l.bf16 %v285
        %v350 = vunpack.c.l.bf16 %v286
        %v351 = vunpack.c.l.bf16 %v287
        %v352 = vunpack.c.l.bf16 %v288
        %v353 = vunpack.c.l.bf16 %v289
        %v354 = vunpack.c.l.bf16 %v290
        %v355 = vunpack.c.l.bf16 %v291
        %v356 = vunpack.c.l.bf16 %v292
        %v357 = vunpack.c.l.bf16 %v293
        %v358 = vunpack.c.l.bf16 %v294
        %v359 = vunpack.c.l.bf16 %v295
        %v360 = vunpack.c.l.bf16 %v296
        %v361 = vunpack.c.l.bf16 %v297
        %v362 = vunpack.c.l.bf16 %v298
        %v363 = vunpack.c.l.bf16 %v299
        %v364 = vunpack.c.l.bf16 %v300
        %v365 = vunpack.c.l.bf16 %v301
        %v366 = vunpack.c.l.bf16 %v302
        %v367 = vunpack.c.l.bf16 %v303
        %v368 = vunpack.c.l.bf16 %v304
        %v369 = vunpack.c.l.bf16 %v305
        %v370 = vunpack.c.l.bf16 %v306
        %v371 = vunpack.c.l.bf16 %v307
        %v372 = vunpack.c.l.bf16 %v308
        %v373 = vunpack.c.l.bf16 %v309
        %v374 = vunpack.c.l.bf16 %v310
        %v375 = vunpack.c.l.bf16 %v311
        %v376 = vunpack.c.l.bf16 %v312
        %v377 = vunpack.c.l.bf16 %v313
        %v378 = vunpack.c.l.bf16 %v314
        %v379 = vunpack.c.l.bf16 %v315
        %v380 = vunpack.c.l.bf16 %v316
        %v381 = vunpack.c.l.bf16 %v317
        %v382 = vunpack.c.l.bf16 %v318
        %v383 = vunpack.c.l.bf16 %v319
        %v384 = vunpack.c.l.bf16 %v320
        %v385 = vunpack.c.l.bf16 %v321
        %v386 = vunpack.c.l.bf16 %v322
        %v387 = vunpack.c.l.bf16 %v323
        %v388 = vunpack.c.l.bf16 %v324
        %v389 = vunpack.c.l.bf16 %v325
        %v390 = vunpack.c.l.bf16 %v326
        %v391 = vunpack.c.l.bf16 %v327
        %v392 = vunpack.c.l.bf16 %v328
        %v393 = vunpack.c.l.bf16 %v329
        %v394 = vunpack.c.l.bf16 %v330
        %v395 = vunpack.c.l.bf16 %v331
        %v396 = vunpack.c.l.bf16 %v332
        %v397 = vunpack.c.l.bf16 %v333
        %v398 = vunpack.c.l.bf16 %v334
        %v399 = vunpack.c.l.bf16 %v335
        %v400 = vunpack.c.l.bf16 %v336
        %v401 = vunpack.c.l.bf16 %v337
        %v402 = vunpack.c.l.bf16 %v338
        %v403 = vunpack.c.l.bf16 %v339
        %v404 = vunpack.c.l.bf16 %v340
        %v405 = vunpack.c.l.bf16 %v341
        %v406 = vunpack.c.l.bf16 %v342
        %v407 = vunpack.c.l.bf16 %v343
        %v408 = vmax.f32 %v344, 1e-06
        %v409 = vmax.f32 %v345, 1e-06
        %v410 = vmax.f32 %v346, 1e-06
        %v411 = vmax.f32 %v347, 1e-06
        %v412 = vmax.f32 %v348, 1e-06
        %v413 = vmax.f32 %v349, 1e-06
        %v414 = vmax.f32 %v350, 1e-06
        %v415 = vmax.f32 %v351, 1e-06
        %v416 = vmax.f32 %v352, 1e-06
        %v417 = vmax.f32 %v353, 1e-06
        %v418 = vmax.f32 %v354, 1e-06
        %v419 = vmax.f32 %v355, 1e-06
        %v420 = vmax.f32 %v356, 1e-06
        %v421 = vmax.f32 %v357, 1e-06
        %v422 = vmax.f32 %v358, 1e-06
        %v423 = vmax.f32 %v359, 1e-06
        %v424 = vmax.f32 %v360, 1e-06
        %v425 = vmax.f32 %v361, 1e-06
        %v426 = vmax.f32 %v362, 1e-06
        %v427 = vmax.f32 %v363, 1e-06
        %v428 = vmax.f32 %v364, 1e-06
        %v429 = vmax.f32 %v365, 1e-06
        %v430 = vmax.f32 %v366, 1e-06
        %v431 = vmax.f32 %v367, 1e-06
        %v432 = vmax.f32 %v368, 1e-06
        %v433 = vmax.f32 %v369, 1e-06
        %v434 = vmax.f32 %v370, 1e-06
        %v435 = vmax.f32 %v371, 1e-06
        %v436 = vmax.f32 %v372, 1e-06
        %v437 = vmax.f32 %v373, 1e-06
        %v438 = vmax.f32 %v374, 1e-06
        %v439 = vmax.f32 %v375, 1e-06
        %v440 = vmax.f32 %v376, 1e-06
        %v441 = vmax.f32 %v377, 1e-06
        %v442 = vmax.f32 %v378, 1e-06
        %v443 = vmax.f32 %v379, 1e-06
        %v444 = vmax.f32 %v380, 1e-06
        %v445 = vmax.f32 %v381, 1e-06
        %v446 = vmax.f32 %v382, 1e-06
        %v447 = vmax.f32 %v383, 1e-06
        %v448 = vmax.f32 %v384, 1e-06
        %v449 = vmax.f32 %v385, 1e-06
        %v450 = vmax.f32 %v386, 1e-06
        %v451 = vmax.f32 %v387, 1e-06
        %v452 = vmax.f32 %v388, 1e-06
        %v453 = vmax.f32 %v389, 1e-06
        %v454 = vmax.f32 %v390, 1e-06
        %v455 = vmax.f32 %v391, 1e-06
        %v456 = vmax.f32 %v392, 1e-06
        %v457 = vmax.f32 %v393, 1e-06
        %v458 = vmax.f32 %v394, 1e-06
        %v459 = vmax.f32 %v395, 1e-06
        %v460 = vmax.f32 %v396, 1e-06
        %v461 = vmax.f32 %v397, 1e-06
        %v462 = vmax.f32 %v398, 1e-06
        %v463 = vmax.f32 %v399, 1e-06
        %v464 = vmax.f32 %v400, 1e-06
        %v465 = vmax.f32 %v401, 1e-06
        %v466 = vmax.f32 %v402, 1e-06
        %v467 = vmax.f32 %v403, 1e-06
        %v468 = vmax.f32 %v404, 1e-06
        %v469 = vmax.f32 %v405, 1e-06
        %v470 = vmax.f32 %v406, 1e-06
        %v471 = vmax.f32 %v407, 1e-06
        %v472 = vmul.f32 %v408, %v408
        %v473 = vmul.f32 %v409, %v409
        %v474 = vmul.f32 %v410, %v410
        %v475 = vmul.f32 %v411, %v411
        %v476 = vmul.f32 %v412, %v412
        %v477 = vmul.f32 %v413, %v413
        %v478 = vmul.f32 %v414, %v414
        %v479 = vmul.f32 %v415, %v415
        %v480 = vmul.f32 %v416, %v416
        %v481 = vmul.f32 %v417, %v417
        %v482 = vmul.f32 %v418, %v418
        %v483 = vmul.f32 %v419, %v419
        %v484 = vmul.f32 %v420, %v420
        %v485 = vmul.f32 %v421, %v421
        %v486 = vmul.f32 %v422, %v422
        %v487 = vmul.f32 %v423, %v423
        %v488 = vmul.f32 %v424, %v424
        %v489 = vmul.f32 %v425, %v425
        %v490 = vmul.f32 %v426, %v426
        %v491 = vmul.f32 %v427, %v427
        %v492 = vmul.f32 %v428, %v428
        %v493 = vmul.f32 %v429, %v429
        %v494 = vmul.f32 %v430, %v430
        %v495 = vmul.f32 %v431, %v431
        %v496 = vmul.f32 %v432, %v432
        %v497 = vmul.f32 %v433, %v433
        %v498 = vmul.f32 %v434, %v434
        %v499 = vmul.f32 %v435, %v435
        %v500 = vmul.f32 %v436, %v436
        %v501 = vmul.f32 %v437, %v437
        %v502 = vmul.f32 %v438, %v438
        %v503 = vmul.f32 %v439, %v439
        %v504 = vmul.f32 %v440, %v440
        %v505 = vmul.f32 %v441, %v441
        %v506 = vmul.f32 %v442, %v442
        %v507 = vmul.f32 %v443, %v443
        %v508 = vmul.f32 %v444, %v444
        %v509 = vmul.f32 %v445, %v445
        %v510 = vmul.f32 %v446, %v446
        %v511 = vmul.f32 %v447, %v447
        %v512 = vmul.f32 %v448, %v448
        %v513 = vmul.f32 %v449, %v449
        %v514 = vmul.f32 %v450, %v450
        %v515 = vmul.f32 %v451, %v451
        %v516 = vmul.f32 %v452, %v452
        %v517 = vmul.f32 %v453, %v453
        %v518 = vmul.f32 %v454, %v454
        %v519 = vmul.f32 %v455, %v455
        %v520 = vmul.f32 %v456, %v456
        %v521 = vmul.f32 %v457, %v457
        %v522 = vmul.f32 %v458, %v458
        %v523 = vmul.f32 %v459, %v459
        %v524 = vmul.f32 %v460, %v460
        %v525 = vmul.f32 %v461, %v461
        %v526 = vmul.f32 %v462, %v462
        %v527 = vmul.f32 %v463, %v463
        %v528 = vmul.f32 %v464, %v464
        %v529 = vmul.f32 %v465, %v465
        %v530 = vmul.f32 %v466, %v466
        %v531 = vmul.f32 %v467, %v467
        %v532 = vmul.f32 %v468, %v468
        %v533 = vmul.f32 %v469, %v469
        %v534 = vmul.f32 %v470, %v470
        %v535 = vmul.f32 %v471, %v471
        %v536 = vmul.f32 %v472, %v408
        %v537 = vmul.f32 %v473, %v409
        %v538 = vmul.f32 %v474, %v410
        %v539 = vmul.f32 %v475, %v411
        %v540 = vmul.f32 %v476, %v412
        %v541 = vmul.f32 %v477, %v413
        %v542 = vmul.f32 %v478, %v414
        %v543 = vmul.f32 %v479, %v415
        %v544 = vmul.f32 %v480, %v416
        %v545 = vmul.f32 %v481, %v417
        %v546 = vmul.f32 %v482, %v418
        %v547 = vmul.f32 %v483, %v419
        %v548 = vmul.f32 %v484, %v420
        %v549 = vmul.f32 %v485, %v421
        %v550 = vmul.f32 %v486, %v422
        %v551 = vmul.f32 %v487, %v423
        %v552 = vmul.f32 %v488, %v424
        %v553 = vmul.f32 %v489, %v425
        %v554 = vmul.f32 %v490, %v426
        %v555 = vmul.f32 %v491, %v427
        %v556 = vmul.f32 %v492, %v428
        %v557 = vmul.f32 %v493, %v429
        %v558 = vmul.f32 %v494, %v430
        %v559 = vmul.f32 %v495, %v431
        %v560 = vmul.f32 %v496, %v432
        %v561 = vmul.f32 %v497, %v433
        %v562 = vmul.f32 %v498, %v434
        %v563 = vmul.f32 %v499, %v435
        %v564 = vmul.f32 %v500, %v436
        %v565 = vmul.f32 %v501, %v437
        %v566 = vmul.f32 %v502, %v438
        %v567 = vmul.f32 %v503, %v439
        %v568 = vmul.f32 %v504, %v440
        %v569 = vmul.f32 %v505, %v441
        %v570 = vmul.f32 %v506, %v442
        %v571 = vmul.f32 %v507, %v443
        %v572 = vmul.f32 %v508, %v444
        %v573 = vmul.f32 %v509, %v445
        %v574 = vmul.f32 %v510, %v446
        %v575 = vmul.f32 %v511, %v447
        %v576 = vmul.f32 %v512, %v448
        %v577 = vmul.f32 %v513, %v449
        %v578 = vmul.f32 %v514, %v450
        %v579 = vmul.f32 %v515, %v451
        %v580 = vmul.f32 %v516, %v452
        %v581 = vmul.f32 %v517, %v453
        %v582 = vmul.f32 %v518, %v454
        %v583 = vmul.f32 %v519, %v455
        %v584 = vmul.f32 %v520, %v456
        %v585 = vmul.f32 %v521, %v457
        %v586 = vmul.f32 %v522, %v458
        %v587 = vmul.f32 %v523, %v459
        %v588 = vmul.f32 %v524, %v460
        %v589 = vmul.f32 %v525, %v461
        %v590 = vmul.f32 %v526, %v462
        %v591 = vmul.f32 %v527, %v463
        %v592 = vmul.f32 %v528, %v464
        %v593 = vmul.f32 %v529, %v465
        %v594 = vmul.f32 %v530, %v466
        %v595 = vmul.f32 %v531, %v467
        %v596 = vmul.f32 %v532, %v468
        %v597 = vmul.f32 %v533, %v469
        %v598 = vmul.f32 %v534, %v470
        %v599 = vmul.f32 %v535, %v471
        %vm600 = vcmask 523264
        %v601 = vsel %vm600, %v536, 0.0
        %v602 = vsel %vm600, %v537, 0.0
        %v603 = vadd.f32 %v601, %v602
        %v604 = vsel %vm600, %v538, 0.0
        %v605 = vadd.f32 %v603, %v604
        %v606 = vsel %vm600, %v539, 0.0
        %v607 = vadd.f32 %v605, %v606
        %v608 = vsel %vm600, %v540, 0.0
        %v609 = vadd.f32 %v607, %v608
        %v610 = vsel %vm600, %v541, 0.0
        %v611 = vadd.f32 %v609, %v610
        %v612 = vsel %vm600, %v542, 0.0
        %v613 = vadd.f32 %v611, %v612
        %v614 = vsel %vm600, %v543, 0.0
        %v615 = vadd.f32 %v613, %v614
        %v616 = vrot.slane %v615, 4
        %v617 = vadd.f32 %v615, %v616
        %v618 = vrot.slane %v617, 2
        %v619 = vadd.f32 %v617, %v618
        %v620 = vrot.slane %v619, 1
        %v621 = vadd.f32 %v619, %v620
        %v622 = vsel %vm600, %v544, 0.0
        %v623 = vsel %vm600, %v545, 0.0
        %v624 = vadd.f32 %v622, %v623
        %v625 = vsel %vm600, %v546, 0.0
        %v626 = vadd.f32 %v624, %v625
        %v627 = vsel %vm600, %v547, 0.0
        %v628 = vadd.f32 %v626, %v627
        %v629 = vsel %vm600, %v548, 0.0
        %v630 = vadd.f32 %v628, %v629
        %v631 = vsel %vm600, %v549, 0.0
        %v632 = vadd.f32 %v630, %v631
        %v633 = vsel %vm600, %v550, 0.0
        %v634 = vadd.f32 %v632, %v633
        %v635 = vsel %vm600, %v551, 0.0
        %v636 = vadd.f32 %v634, %v635
        %v637 = vrot.slane %v636, 4
        %v638 = vadd.f32 %v636, %v637
        %v639 = vrot.slane %v638, 2
        %v640 = vadd.f32 %v638, %v639
        %v641 = vrot.slane %v640, 1
        %v642 = vadd.f32 %v640, %v641
        %v643 = vsel %vm600, %v552, 0.0
        %v644 = vsel %vm600, %v553, 0.0
        %v645 = vadd.f32 %v643, %v644
        %v646 = vsel %vm600, %v554, 0.0
        %v647 = vadd.f32 %v645, %v646
        %v648 = vsel %vm600, %v555, 0.0
        %v649 = vadd.f32 %v647, %v648
        %v650 = vsel %vm600, %v556, 0.0
        %v651 = vadd.f32 %v649, %v650
        %v652 = vsel %vm600, %v557, 0.0
        %v653 = vadd.f32 %v651, %v652
        %v654 = vsel %vm600, %v558, 0.0
        %v655 = vadd.f32 %v653, %v654
        %v656 = vsel %vm600, %v559, 0.0
        %v657 = vadd.f32 %v655, %v656
        %v658 = vrot.slane %v657, 4
        %v659 = vadd.f32 %v657, %v658
        %v660 = vrot.slane %v659, 2
        %v661 = vadd.f32 %v659, %v660
        %v662 = vrot.slane %v661, 1
        %v663 = vadd.f32 %v661, %v662
        %v664 = vsel %vm600, %v560, 0.0
        %v665 = vsel %vm600, %v561, 0.0
        %v666 = vadd.f32 %v664, %v665
        %v667 = vsel %vm600, %v562, 0.0
        %v668 = vadd.f32 %v666, %v667
        %v669 = vsel %vm600, %v563, 0.0
        %v670 = vadd.f32 %v668, %v669
        %v671 = vsel %vm600, %v564, 0.0
        %v672 = vadd.f32 %v670, %v671
        %v673 = vsel %vm600, %v565, 0.0
        %v674 = vadd.f32 %v672, %v673
        %v675 = vsel %vm600, %v566, 0.0
        %v676 = vadd.f32 %v674, %v675
        %v677 = vsel %vm600, %v567, 0.0
        %v678 = vadd.f32 %v676, %v677
        %v679 = vrot.slane %v678, 4
        %v680 = vadd.f32 %v678, %v679
        %v681 = vrot.slane %v680, 2
        %v682 = vadd.f32 %v680, %v681
        %v683 = vrot.slane %v682, 1
        %v684 = vadd.f32 %v682, %v683
        %v685 = vsel %vm600, %v568, 0.0
        %v686 = vsel %vm600, %v569, 0.0
        %v687 = vadd.f32 %v685, %v686
        %v688 = vsel %vm600, %v570, 0.0
        %v689 = vadd.f32 %v687, %v688
        %v690 = vsel %vm600, %v571, 0.0
        %v691 = vadd.f32 %v689, %v690
        %v692 = vsel %vm600, %v572, 0.0
        %v693 = vadd.f32 %v691, %v692
        %v694 = vsel %vm600, %v573, 0.0
        %v695 = vadd.f32 %v693, %v694
        %v696 = vsel %vm600, %v574, 0.0
        %v697 = vadd.f32 %v695, %v696
        %v698 = vsel %vm600, %v575, 0.0
        %v699 = vadd.f32 %v697, %v698
        %v700 = vrot.slane %v699, 4
        %v701 = vadd.f32 %v699, %v700
        %v702 = vrot.slane %v701, 2
        %v703 = vadd.f32 %v701, %v702
        %v704 = vrot.slane %v703, 1
        %v705 = vadd.f32 %v703, %v704
        %v706 = vsel %vm600, %v576, 0.0
        %v707 = vsel %vm600, %v577, 0.0
        %v708 = vadd.f32 %v706, %v707
        %v709 = vsel %vm600, %v578, 0.0
        %v710 = vadd.f32 %v708, %v709
        %v711 = vsel %vm600, %v579, 0.0
        %v712 = vadd.f32 %v710, %v711
        %v713 = vsel %vm600, %v580, 0.0
        %v714 = vadd.f32 %v712, %v713
        %v715 = vsel %vm600, %v581, 0.0
        %v716 = vadd.f32 %v714, %v715
        %v717 = vsel %vm600, %v582, 0.0
        %v718 = vadd.f32 %v716, %v717
        %v719 = vsel %vm600, %v583, 0.0
        %v720 = vadd.f32 %v718, %v719
        %v721 = vrot.slane %v720, 4
        %v722 = vadd.f32 %v720, %v721
        %v723 = vrot.slane %v722, 2
        %v724 = vadd.f32 %v722, %v723
        %v725 = vrot.slane %v724, 1
        %v726 = vadd.f32 %v724, %v725
        %v727 = vsel %vm600, %v584, 0.0
        %v728 = vsel %vm600, %v585, 0.0
        %v729 = vadd.f32 %v727, %v728
        %v730 = vsel %vm600, %v586, 0.0
        %v731 = vadd.f32 %v729, %v730
        %v732 = vsel %vm600, %v587, 0.0
        %v733 = vadd.f32 %v731, %v732
        %v734 = vsel %vm600, %v588, 0.0
        %v735 = vadd.f32 %v733, %v734
        %v736 = vsel %vm600, %v589, 0.0
        %v737 = vadd.f32 %v735, %v736
        %v738 = vsel %vm600, %v590, 0.0
        %v739 = vadd.f32 %v737, %v738
        %v740 = vsel %vm600, %v591, 0.0
        %v741 = vadd.f32 %v739, %v740
        %v742 = vrot.slane %v741, 4
        %v743 = vadd.f32 %v741, %v742
        %v744 = vrot.slane %v743, 2
        %v745 = vadd.f32 %v743, %v744
        %v746 = vrot.slane %v745, 1
        %v747 = vadd.f32 %v745, %v746
        %v748 = vsel %vm600, %v592, 0.0
        %v749 = vsel %vm600, %v593, 0.0
        %v750 = vadd.f32 %v748, %v749
        %v751 = vsel %vm600, %v594, 0.0
        %v752 = vadd.f32 %v750, %v751
        %v753 = vsel %vm600, %v595, 0.0
        %v754 = vadd.f32 %v752, %v753
        %v755 = vsel %vm600, %v596, 0.0
        %v756 = vadd.f32 %v754, %v755
        %v757 = vsel %vm600, %v597, 0.0
        %v758 = vadd.f32 %v756, %v757
        %v759 = vsel %vm600, %v598, 0.0
        %v760 = vadd.f32 %v758, %v759
        %v761 = vsel %vm600, %v599, 0.0
        %v762 = vadd.f32 %v760, %v761
        %v763 = vrot.slane %v762, 4
        %v764 = vadd.f32 %v762, %v763
        %v765 = vrot.slane %v764, 2
        %v766 = vadd.f32 %v764, %v765
        %v767 = vrot.slane %v766, 1
        %v768 = vadd.f32 %v766, %v767
        %v769 = vrcp.pop 64.0
        %v770 = vmul.f32 64.0, %v769
        %v771 = vsub.f32 1.0, %v770
        %v772 = vmul.f32 %v769, %v771
        %v773 = vadd.f32 %v769, %v772
        %vm774 = vweird.f32 %v769
        %v775 = vsel %vm774, %v769, %v773
        %v776 = vmul.f32 %v621, %v775
        %v777 = vmul.f32 %v642, %v775
        %v778 = vmul.f32 %v663, %v775
        %v779 = vmul.f32 %v684, %v775
        %v780 = vmul.f32 %v705, %v775
        %v781 = vmul.f32 %v726, %v775
        %v782 = vmul.f32 %v747, %v775
        %v783 = vmul.f32 %v768, %v775
        %v784 = vpow.f32 %v776, 0.33333334
        %v785 = vpow.f32 %v777, 0.33333334
        %v786 = vpow.f32 %v778, 0.33333334
        %v787 = vpow.f32 %v779, 0.33333334
        %v788 = vpow.f32 %v780, 0.33333334
        %v789 = vpow.f32 %v781, 0.33333334
        %v790 = vpow.f32 %v782, 0.33333334
        %v791 = vpow.f32 %v783, 0.33333334
        %v792 = vld [vmem:[#allocation5] sm:$0xff]
        %v793 = vld [vmem:[#allocation5 + $0x8] sm:$0xff]
        %v794 = vld [vmem:[#allocation5 + $0x10] sm:$0xff]
        %v795 = vld [vmem:[#allocation5 + $0x18] sm:$0xff]
        %v796 = vld [vmem:[#allocation5 + $0x20] sm:$0xff]
        %v797 = vld [vmem:[#allocation5 + $0x28] sm:$0xff]
        %v798 = vld [vmem:[#allocation5 + $0x30] sm:$0xff]
        %v799 = vld [vmem:[#allocation5 + $0x38] sm:$0xff]
        %v800 = vld [vmem:[%s2] sm:$0x1]
        %v802 = vperm.slane %v800, 0
        %vm812 = vcmask 1041409
        %v813 = vsel %vm812, %v785, %v784
        %vm814 = vcmask 1042434
        %v815 = vsel %vm814, %v786, %v813
        %vm816 = vcmask 1043459
        %v817 = vsel %vm816, %v787, %v815
        %vm818 = vcmask 1044484
        %v819 = vsel %vm818, %v788, %v817
        %vm820 = vcmask 1045509
        %v821 = vsel %vm820, %v789, %v819
        %vm822 = vcmask 1046534
        %v823 = vsel %vm822, %v790, %v821
        %vm824 = vcmask 1047559
        %v825 = vsel %vm824, %v791, %v823
        %v826 = vsel %vm600, %v825, 0
        %828 = vmatpush.msra.mxu0 0.0
        %829 = vmatpush.msra.mxu0 0.0
        %830 = vmatpush.msra.mxu0 0.0
        %831 = vmatpush.msra.mxu0 0.0
        %832 = vmatpush.msra.mxu0 0.0
        %833 = vmatpush.msra.mxu0 0.0
        %834 = vmatpush.msra.mxu0 0.0
        %835 = vmatpush.msra.mxu0 0.0
        %836 = vmatpush.msra.mxu0 %v799
        %837 = vmatpush.msra.mxu0 %v798
        %838 = vmatpush.msra.mxu0 %v797
        %839 = vmatpush.msra.mxu0 %v796
        %840 = vmatpush.msra.mxu0 %v795
        %841 = vmatpush.msra.mxu0 %v794
        %842 = vmatpush.msra.mxu0 %v793
        %843 = vmatpush.msra.mxu0 %v792
        %844 = vmatmul.f32.gmra.mxu0 %v826
        %v845 = vpop.f32.mrf.mxu0
        %v846 = vadd.f32 %v802, %v845
        %847 = vdwg.mxu0
        %v848 = vmul.f32 %v846, 0.01
        %v849 = vmax.f32 %v846, %v848
        %v850 = vld [vmem:[#allocation7] sm:$0xff]
        %v851 = vld [vmem:[#allocation7 + $0x8] sm:$0xff]
        %v852 = vld [vmem:[#allocation7 + $0x10] sm:$0xff]
        %v853 = vld [vmem:[#allocation7 + $0x18] sm:$0xff]
        %v854 = vld [vmem:[#allocation7 + $0x20] sm:$0xff]
        %v855 = vld [vmem:[#allocation7 + $0x28] sm:$0xff]
        %v856 = vld [vmem:[#allocation7 + $0x30] sm:$0xff]
        %v857 = vld [vmem:[#allocation7 + $0x38] sm:$0xff]
        %v858 = vld [vmem:[#allocation7 + $0x40] sm:$0xff]
        %v859 = vld [vmem:[#allocation7 + $0x48] sm:$0xff]
        %v860 = vld [vmem:[#allocation7 + $0x50] sm:$0xff]
        %v861 = vld [vmem:[#allocation7 + $0x58] sm:$0xff]
        %v862 = vld [vmem:[#allocation7 + $0x60] sm:$0xff]
        %v863 = vld [vmem:[#allocation7 + $0x68] sm:$0xff]
        %v864 = vld [vmem:[#allocation7 + $0x70] sm:$0xff]
        %v865 = vld [vmem:[#allocation7 + $0x78] sm:$0xff]
        %v866 = vld [vmem:[%s4] sm:$0x1]
        %v868 = vperm.slane %v866, 0
        %870 = vmatpush.msra.mxu0 %v865
        %871 = vmatpush.msra.mxu0 %v864
        %872 = vmatpush.msra.mxu0 %v863
        %873 = vmatpush.msra.mxu0 %v862
        %874 = vmatpush.msra.mxu0 %v861
        %875 = vmatpush.msra.mxu0 %v860
        %876 = vmatpush.msra.mxu0 %v859
        %877 = vmatpush.msra.mxu0 %v858
        %878 = vmatpush.msra.mxu0 %v857
        %879 = vmatpush.msra.mxu0 %v856
        %880 = vmatpush.msra.mxu0 %v855
        %881 = vmatpush.msra.mxu0 %v854
        %882 = vmatpush.msra.mxu0 %v853
        %883 = vmatpush.msra.mxu0 %v852
        %884 = vmatpush.msra.mxu0 %v851
        %885 = vmatpush.msra.mxu0 %v850
        %886 = vmatmul.f32.gmra.mxu0 %v849
        %v887 = vpop.f32.mrf.mxu0
        %v888 = vadd.f32 %v868, %v887
        %889 = vdwg.mxu0
        %890 = vst [vmem:[%s278] sm:$0xff] %v888
        %s891 = sand.u32 %s141, 1
        %s892 = scalar_lea.sflag [#allocation4], %s891
        %s893 = sand.u32 %s141, 1
        %s894 = smul.addr %s893, 8
        %s895 = scalar_lea.vmem [#allocation8], %s894
        // Predicated region
        $region53: #{tpu_custom_call.1} parent=39 // pred_check
          %p896 = pneg %p151
        $region54: #{tpu_custom_call.1} parent=39 // pred_check_branch
          %898 = sbr.rel (%p896) target = $region56
        $region55: #{tpu_custom_call.1} parent=39 // pred_region
          %900 = vsyncadd %s892, 0
          %s901 = smul.addr %s23, 8
          %s902 = scalar_lea.hbm %s5, %s901
          %s904 = sshll.u32 %s895, 4
          %s905 = int_to_ptr.vmem [resolvable:$true] %s904
          %s906 = sshll.u32 %s902, 4
          %s907 = int_to_ptr.hbm [resolvable:$true] %s906
          %909 = dma.vmem_to_hbm [thread:$0]  %s905, 128, %s907, %s892
        $region56: #{tpu_custom_call.1} parent=39 // pred_fallthru
          _
      $region40: #{tpu_custom_call.1} parent=5 // pred_fallthru
        _
      %p910 = scmp.le.s32.totalorder 2, %s18
      // Predicated region
      $region57: #{tpu_custom_call.1} parent=5 // pred_check
        %p911 = pneg %p910
      $region58: #{tpu_custom_call.1} parent=5 // pred_check_branch
        %913 = sbr.rel (%p911) target = $region60
      $region59: #{tpu_custom_call.1} parent=5 // pred_region
        %s914 = ssub.s32 %s18, 2
        // Predicated region
        $region61: #{tpu_custom_call.1} parent=59 // pred_check
          %p915 = pneg %p157
        $region62: #{tpu_custom_call.1} parent=59 // pred_check_branch
          %917 = sbr.rel (%p915) target = $region64
        $region63: #{tpu_custom_call.1} parent=59 // pred_region
          %s918 = sand.u32 %s142, 1
          %s919 = scalar_lea.sflag [#allocation4], %s918
          %s920 = sand.u32 %s142, 1
          %s921 = smul.addr %s920, 8
          %s922 = scalar_lea.vmem [#allocation8], %s921
          %924 = dma.done %s919, 128
        $region64: #{tpu_custom_call.1} parent=59 // pred_fallthru
          _
      $region60: #{tpu_custom_call.1} parent=5 // pred_fallthru
        _
    $region6: #{tpu_custom_call.1} parent=1 // loop_footer
      %s22 = sadd.s32 1, %s18
    $region7: #{tpu_custom_call.1} parent=1 // loop_footer_branch
      %17 = sbr.rel target = $region3
    $region8: #{tpu_custom_call.1} parent=1 // loop_exit
      _
    %925 = vsyncpa [#allocation3], 1
    %s926 = scalar_lea.sflag [#allocation3], 1
    %927 = vsyncpa %s926, 1
    %928 = vsyncpa [#allocation6], 1
    %929 = vsyncpa [#allocation4], 1
    %s930 = scalar_lea.sflag [#allocation4], 1
    %931 = vsyncpa %s930, 1

</llo_original>
